<compile_context>
chip_gen: v7x
topology: tpu7x:2x2x1
jax: 0.10.0
libtpu: 0.0.40
codegen_flags: <defaults>
</compile_context>

<pallas_src>
import functools
import math

import numpy as np
import jax
import jax.numpy as jnp
from jax import lax
from jax.experimental import pallas as pl
from jax.experimental.pallas import tpu as pltpu


def _conv_bn_relu_maxpool_kernel(ph_ref, w_ref, shift_ref, mi_ref, mj_ref,
                                 out_ref, *, V, C2p):
    """One grid step == B_tile images.

    ph_ref   : (M, 16*C1)        bf16  flattened 16-phase input (M = B_tile*G)
    w_ref    : (4, 16*C1, 4*C2p) bf16  BN-scale-folded weights per tap offset
    shift_ref: (1, C2p)          f32   folded BN shift
    mi_ref   : (M, 1)            f32   0.0 where pool row index i == 0
    mj_ref   : (M, 1)            f32   0.0 where pool col index j == 0
    out_ref  : (M, C2p)          f32   pooled output (padded layout)
    """
    M = out_ref.shape[0]
    ph = ph_ref[...]                                     # (M, K) bf16

    def shift_up(y, k):
        # y'[m] = y[m + k]; bottom rows zero-filled (they land on pad rows only).
        if k == 0:
            return y
        return jnp.concatenate(
            [y[k:, :], jnp.zeros((k, y.shape[1]), y.dtype)], axis=0)

    # Conv as 4 bf16 MXU matmuls; each produces the 4 conv-output parity groups
    # side by side in the lane dimension (lane-dense, 4*C2p wide).
    acc = jnp.zeros((M, 4 * C2p), jnp.float32)
    for du in range(2):
        for dv in range(2):
            prod = jnp.dot(ph, w_ref[du * 2 + dv],
                           preferred_element_type=jnp.float32)  # (M, 4*C2p)
            acc = acc + shift_up(prod, du * V + dv)

    # Folded BatchNorm shift (eval mode) + ReLU.
    shift = shift_ref[...]                               # (1, C2p)
    ys = []
    for g in range(4):                                   # g = 2*a + c  (parity a,c)
        y = acc[:, g * C2p:(g + 1) * C2p] + shift
        ys.append(jnp.maximum(y, 0.0))
    y00, y01, y10, y11 = ys

    # MaxPool2d(3, stride=2, padding=1): 9 full-tile maxima over the parity
    # groups.  Out-of-range taps are masked to 0, exact because input >= 0.
    mi = mi_ref[...]
    mj = mj_ref[...]
    mij = mi * mj

    def shift_down(y, k):
        # y'[m] = y[m - k]; top rows zero-filled.
        return jnp.concatenate(
            [jnp.zeros((k, y.shape[1]), y.dtype), y[:M - k, :]], axis=0)

    p = jnp.maximum(y00, y01)
    p = jnp.maximum(p, y10)
    p = jnp.maximum(p, y11)
    p = jnp.maximum(p, shift_down(y01, 1) * mj)
    p = jnp.maximum(p, shift_down(y11, 1) * mj)
    p = jnp.maximum(p, shift_down(y10, V) * mi)
    p = jnp.maximum(p, shift_down(y11, V) * mi)
    p = jnp.maximum(p, shift_down(y11, V + 1) * mij)

    out_ref[...] = p.astype(out_ref.dtype)


def conv_bn_relu_maxpool(x_nchw, weight, gamma, beta, running_mean,
                         running_var, eps=1e-5):
    """Forward pass of the PyTorch conv_bn_relu_maxpool module (eval-mode BN)."""
    N, C1, H, W = x_nchw.shape
    C2 = weight.shape[0]
    assert H % 4 == 0 and W % 4 == 0, "kernel assumes H, W multiples of 4"
    Ho, Wo = H // 2, W // 2                 # conv output (k3 s2 p1, even H/W)
    Po, Qo = Ho // 2, Wo // 2               # pool output (k3 s2 p1, even Ho/Wo)
    U, V = Po + 1, Qo + 1                   # conv parity-group grid + 1 halo
    G = ((U * V + 7) // 8) * 8              # per-image row count (sublane aligned)
    C2p = ((C2 + 127) // 128) * 128         # lane-dense padded output channels
    K = 16 * C1

    # ---- activations: NCHW -> NHWC, conv zero-pad, 16-phase (mod-4) split ----
    x = jnp.transpose(x_nchw, (0, 2, 3, 1)).astype(jnp.float32)
    xp = jnp.pad(x, ((0, 0), (1, 1), (1, 1), (0, 0)))
    xp = jnp.pad(xp, ((0, 0), (0, 4 * U - (H + 2)), (0, 4 * V - (W + 2)), (0, 0)))
    phases = [xp[:, r::4, s::4, :] for r in range(4) for s in range(4)]
    ph = jnp.stack(phases, axis=3).reshape(N, U, V, K)    # channel = (4r+s)*C1+ci
    ph = ph.reshape(N, U * V, K)
    ph = jnp.pad(ph, ((0, 0), (0, G - U * V), (0, 0)))
    ph = ph.reshape(N * G, K).astype(jnp.bfloat16)

    # ---- weights: fold BN scale, pad channels, regroup per tap offset --------
    inv = gamma / jnp.sqrt(running_var + eps)
    w_f = jnp.transpose(weight, (2, 3, 1, 0)).astype(jnp.float32)
    w_f = w_f * inv[None, None, None, :]                  # fold BN scale (weights)
    w_f = jnp.pad(w_f, ((0, 0), (0, 0), (0, 0), (0, C2p - C2)))   # (3,3,C1,C2p)
    sel = np.zeros((2, 2, 2, 2, 16, 3, 3), np.float32)    # (a,c,du,dv,blk,kh,kw)
    for a in range(2):
        for c in range(2):
            for kh in range(3):
                for kw in range(3):
                    th, tw = 2 * a + kh, 2 * c + kw
                    sel[a, c, th // 4, tw // 4,
                        4 * (th % 4) + (tw % 4), kh, kw] = 1.0
    wblk = jnp.einsum('acuvbhw,hwio->acuvbio', jnp.asarray(sel), w_f)
    wmat = jnp.transpose(wblk, (2, 3, 4, 5, 0, 1, 6)).reshape(4, K, 4 * C2p)
    wmat = wmat.astype(jnp.bfloat16)

    shift = jnp.pad(beta - running_mean * inv, (0, C2p - C2)).reshape(1, C2p)
    shift = shift.astype(jnp.float32)

    # ---- per-row pool boundary masks (periodic per image) --------------------
    mi_np = np.zeros((G, 1), np.float32)
    mj_np = np.zeros((G, 1), np.float32)
    for u in range(U):
        for v in range(V):
            mi_np[u * V + v, 0] = 1.0 if u >= 1 else 0.0
            mj_np[u * V + v, 0] = 1.0 if v >= 1 else 0.0
    mi = jnp.asarray(np.tile(mi_np, (N, 1)))
    mj = jnp.asarray(np.tile(mj_np, (N, 1)))

    # ---- pallas call ----------------------------------------------------------
    B_tile = math.gcd(N, 8)                 # images per grid step
    M = B_tile * G
    kernel = functools.partial(_conv_bn_relu_maxpool_kernel, V=V, C2p=C2p)

    out = pl.pallas_call(
        kernel,
        out_shape=jax.ShapeDtypeStruct((N * G, C2p), jnp.float32),
        grid_spec=pltpu.PrefetchScalarGridSpec(
            num_scalar_prefetch=0,
            grid=(N // B_tile,),
            in_specs=[
                pl.BlockSpec((M, K), lambda n: (n, 0)),
                pl.BlockSpec((4, K, 4 * C2p), lambda n: (0, 0, 0)),
                pl.BlockSpec((1, C2p), lambda n: (0, 0)),
                pl.BlockSpec((M, 1), lambda n: (n, 0)),
                pl.BlockSpec((M, 1), lambda n: (n, 0)),
            ],
            out_specs=pl.BlockSpec((M, C2p), lambda n: (n, 0)),
        ),
        compiler_params=pltpu.CompilerParams(
            dimension_semantics=("parallel",),
            vmem_limit_bytes=32 * 1024 * 1024),
    )(ph, wmat, shift, mi, mj)

    # ---- trim padding / reorder to NCHW ---------------------------------------
    out = out.reshape(N, G, C2p)[:, :U * V, :C2].reshape(N, U, V, C2)
    out = out[:, :Po, :Qo, :]
    return jnp.transpose(out, (0, 3, 1, 2))


def _reference(x, weight, gamma, beta, mean, var, eps=1e-5, quantize=False):
    """Pure-JAX reference (NCHW), mirroring the PyTorch module in eval mode.

    quantize=True mimics the kernel's bf16 MXU inputs (BN scale folded into
    the weights before rounding) for a tight numerical comparison.
    """
    inv = gamma / jnp.sqrt(var + eps)
    w = weight.astype(jnp.float32) * inv[:, None, None, None]
    xq = x.astype(jnp.float32)
    if quantize:
        w = w.astype(jnp.bfloat16).astype(jnp.float32)
        xq = xq.astype(jnp.bfloat16).astype(jnp.float32)
    y = lax.conv_general_dilated(
        xq, w, window_strides=(2, 2), padding=((1, 1), (1, 1)),
        dimension_numbers=("NCHW", "OIHW", "NCHW"),
        precision=lax.Precision.HIGHEST)
    y = y + (beta - mean * inv)[None, :, None, None]
    y = jnp.maximum(y, 0.0)
    y = lax.reduce_window(y, -jnp.inf, lax.max,
                          window_dimensions=(1, 1, 3, 3),
                          window_strides=(1, 1, 2, 2),
                          padding=((0, 0), (0, 0), (1, 1), (1, 1)))
    return y


if __name__ == "__main__":
    key = jax.random.PRNGKey(0)
    k_x, k_w, k_g, k_b, k_m, k_v = jax.random.split(key, 6)

    N, C1, H, W = 2, 4, 16, 16
    C2 = 8

    x = jax.random.normal(k_x, (N, C1, H, W), dtype=jnp.float32)
    weight = 0.1 * jax.random.normal(k_w, (C2, C1, 3, 3), dtype=jnp.float32)
    gamma = 1.0 + 0.1 * jax.random.normal(k_g, (C2,), dtype=jnp.float32)
    beta = 0.1 * jax.random.normal(k_b, (C2,), dtype=jnp.float32)
    running_mean = 0.1 * jax.random.normal(k_m, (C2,), dtype=jnp.float32)
    running_var = 0.5 + jnp.abs(jax.random.normal(k_v, (C2,), dtype=jnp.float32))

    out = conv_bn_relu_maxpool(x, weight, gamma, beta, running_mean, running_var)
    out = jax.block_until_ready(out)

    assert out.shape == (N, C2, 4, 4), out.shape

    # Tight check against a reference that uses the same bf16-rounded inputs.
    ref_q = _reference(x, weight, gamma, beta, running_mean, running_var,
                       quantize=True)
    assert jnp.allclose(out, ref_q, atol=2e-3, rtol=2e-3), \
        f"max abs err vs quantized ref = {jnp.max(jnp.abs(out - ref_q))}"

    # Loose sanity check against the pure-f32 reference (bf16 MXU inputs).
    ref = _reference(x, weight, gamma, beta, running_mean, running_var)
    assert jnp.allclose(out, ref, atol=1e-1, rtol=1e-1), \
        f"max abs err vs f32 ref = {jnp.max(jnp.abs(out - ref))}"

    print("KERNEL_OK")
</pallas_src>

<mosaic_0001>
module attributes {stable_mosaic.version = 11 : i64} {
  func.func @_conv_bn_relu_maxpool_kernel(%arg0: i32, %arg1: memref<64x64xbf16, #tpu.memory_space<vmem>>, %arg2: memref<4x64x512xbf16, #tpu.memory_space<vmem>>, %arg3: memref<1x128xf32, #tpu.memory_space<vmem>>, %arg4: memref<64x1xf32, #tpu.memory_space<vmem>>, %arg5: memref<64x1xf32, #tpu.memory_space<vmem>>, %arg6: memref<64x128xf32, #tpu.memory_space<vmem>>) attributes {dimension_semantics = [#tpu.dimension_semantics<parallel>], iteration_bounds = array<i64: 1>, scalar_prefetch = 0 : i64, scratch_operands = 0 : i64, tpu.core_type = #tpu.core_type<tc>, window_params = [{transform_indices = @transform_0, window_bounds = array<i64: 64, 64>}, {pipeline_mode = #tpu.pipeline_mode<synchronous>, transform_indices = @transform_1, window_bounds = array<i64: 4, 64, 512>}, {pipeline_mode = #tpu.pipeline_mode<synchronous>, transform_indices = @transform_2, window_bounds = array<i64: 1, 128>}, {transform_indices = @transform_3, window_bounds = array<i64: 64, 1>}, {transform_indices = @transform_4, window_bounds = array<i64: 64, 1>}, {transform_indices = @transform_5, window_bounds = array<i64: 64, 128>}]} {
    %c0 = arith.constant 0 : index
    %c0_0 = arith.constant 0 : index
    %0 = vector.load %arg1[%c0, %c0_0] : memref<64x64xbf16, #tpu.memory_space<vmem>>, vector<64x64xbf16>
    %cst = arith.constant 0.000000e+00 : f32
    %1 = vector.broadcast %cst : f32 to vector<64x512xf32>
    %c0_1 = arith.constant 0 : index
    %c0_2 = arith.constant 0 : index
    %c0_3 = arith.constant 0 : index
    %2 = vector.load %arg2[%c0_1, %c0_2, %c0_3] : memref<4x64x512xbf16, #tpu.memory_space<vmem>>, vector<1x64x512xbf16>
    %3 = vector.shape_cast %2 : vector<1x64x512xbf16> to vector<64x512xbf16>
    %cst_4 = arith.constant dense<0.000000e+00> : vector<64x512xf32>
    %4 = tpu.matmul %0, %3, %cst_4 {dimension_numbers = #tpu.dot_dimension_numbers<[1], [0], [0], [1], [0, 0, 1, 1], [], []>} : vector<64x64xbf16>, vector<64x512xbf16>, vector<64x512xf32> -> vector<64x512xf32>
    %5 = arith.addf %1, %4 : vector<64x512xf32>
    %c1 = arith.constant 1 : index
    %c0_5 = arith.constant 0 : index
    %c0_6 = arith.constant 0 : index
    %6 = vector.load %arg2[%c1, %c0_5, %c0_6] : memref<4x64x512xbf16, #tpu.memory_space<vmem>>, vector<1x64x512xbf16>
    %7 = vector.shape_cast %6 : vector<1x64x512xbf16> to vector<64x512xbf16>
    %cst_7 = arith.constant dense<0.000000e+00> : vector<64x512xf32>
    %8 = tpu.matmul %0, %7, %cst_7 {dimension_numbers = #tpu.dot_dimension_numbers<[1], [0], [0], [1], [0, 0, 1, 1], [], []>} : vector<64x64xbf16>, vector<64x512xbf16>, vector<64x512xf32> -> vector<64x512xf32>
    %9 = vector.extract_strided_slice %8 {offsets = [1, 0], sizes = [63, 512], strides = [1, 1]} : vector<64x512xf32> to vector<63x512xf32>
    %cst_8 = arith.constant 0.000000e+00 : f32
    %10 = vector.broadcast %cst_8 : f32 to vector<1x512xf32>
    %11 = tpu.concatenate %9, %10 in 0 : vector<63x512xf32>, vector<1x512xf32> -> vector<64x512xf32>
    %12 = arith.addf %5, %11 : vector<64x512xf32>
    %c2 = arith.constant 2 : index
    %c0_9 = arith.constant 0 : index
    %c0_10 = arith.constant 0 : index
    %13 = vector.load %arg2[%c2, %c0_9, %c0_10] : memref<4x64x512xbf16, #tpu.memory_space<vmem>>, vector<1x64x512xbf16>
    %14 = vector.shape_cast %13 : vector<1x64x512xbf16> to vector<64x512xbf16>
    %cst_11 = arith.constant dense<0.000000e+00> : vector<64x512xf32>
    %15 = tpu.matmul %0, %14, %cst_11 {dimension_numbers = #tpu.dot_dimension_numbers<[1], [0], [0], [1], [0, 0, 1, 1], [], []>} : vector<64x64xbf16>, vector<64x512xbf16>, vector<64x512xf32> -> vector<64x512xf32>
    %16 = vector.extract_strided_slice %15 {offsets = [5, 0], sizes = [59, 512], strides = [1, 1]} : vector<64x512xf32> to vector<59x512xf32>
    %cst_12 = arith.constant 0.000000e+00 : f32
    %17 = vector.broadcast %cst_12 : f32 to vector<5x512xf32>
    %18 = tpu.concatenate %16, %17 in 0 : vector<59x512xf32>, vector<5x512xf32> -> vector<64x512xf32>
    %19 = arith.addf %12, %18 : vector<64x512xf32>
    %c3 = arith.constant 3 : index
    %c0_13 = arith.constant 0 : index
    %c0_14 = arith.constant 0 : index
    %20 = vector.load %arg2[%c3, %c0_13, %c0_14] : memref<4x64x512xbf16, #tpu.memory_space<vmem>>, vector<1x64x512xbf16>
    %21 = vector.shape_cast %20 : vector<1x64x512xbf16> to vector<64x512xbf16>
    %cst_15 = arith.constant dense<0.000000e+00> : vector<64x512xf32>
    %22 = tpu.matmul %0, %21, %cst_15 {dimension_numbers = #tpu.dot_dimension_numbers<[1], [0], [0], [1], [0, 0, 1, 1], [], []>} : vector<64x64xbf16>, vector<64x512xbf16>, vector<64x512xf32> -> vector<64x512xf32>
    %23 = vector.extract_strided_slice %22 {offsets = [6, 0], sizes = [58, 512], strides = [1, 1]} : vector<64x512xf32> to vector<58x512xf32>
    %cst_16 = arith.constant 0.000000e+00 : f32
    %24 = vector.broadcast %cst_16 : f32 to vector<6x512xf32>
    %25 = tpu.concatenate %23, %24 in 0 : vector<58x512xf32>, vector<6x512xf32> -> vector<64x512xf32>
    %26 = arith.addf %19, %25 : vector<64x512xf32>
    %c0_17 = arith.constant 0 : index
    %c0_18 = arith.constant 0 : index
    %27 = vector.load %arg3[%c0_17, %c0_18] : memref<1x128xf32, #tpu.memory_space<vmem>>, vector<1x128xf32>
    %28 = vector.extract_strided_slice %26 {offsets = [0, 0], sizes = [64, 128], strides = [1, 1]} : vector<64x512xf32> to vector<64x128xf32>
    %29 = vector.broadcast %27 : vector<1x128xf32> to vector<64x128xf32>
    %30 = arith.addf %28, %29 : vector<64x128xf32>
    %cst_19 = arith.constant 0.000000e+00 : f32
    %31 = vector.broadcast %cst_19 : f32 to vector<64x128xf32>
    %32 = arith.maximumf %30, %31 : vector<64x128xf32>
    %33 = vector.extract_strided_slice %26 {offsets = [0, 128], sizes = [64, 128], strides = [1, 1]} : vector<64x512xf32> to vector<64x128xf32>
    %34 = vector.broadcast %27 : vector<1x128xf32> to vector<64x128xf32>
    %35 = arith.addf %33, %34 : vector<64x128xf32>
    %cst_20 = arith.constant 0.000000e+00 : f32
    %36 = vector.broadcast %cst_20 : f32 to vector<64x128xf32>
    %37 = arith.maximumf %35, %36 : vector<64x128xf32>
    %38 = vector.extract_strided_slice %26 {offsets = [0, 256], sizes = [64, 128], strides = [1, 1]} : vector<64x512xf32> to vector<64x128xf32>
    %39 = vector.broadcast %27 : vector<1x128xf32> to vector<64x128xf32>
    %40 = arith.addf %38, %39 : vector<64x128xf32>
    %cst_21 = arith.constant 0.000000e+00 : f32
    %41 = vector.broadcast %cst_21 : f32 to vector<64x128xf32>
    %42 = arith.maximumf %40, %41 : vector<64x128xf32>
    %43 = vector.extract_strided_slice %26 {offsets = [0, 384], sizes = [64, 128], strides = [1, 1]} : vector<64x512xf32> to vector<64x128xf32>
    %44 = vector.broadcast %27 : vector<1x128xf32> to vector<64x128xf32>
    %45 = arith.addf %43, %44 : vector<64x128xf32>
    %cst_22 = arith.constant 0.000000e+00 : f32
    %46 = vector.broadcast %cst_22 : f32 to vector<64x128xf32>
    %47 = arith.maximumf %45, %46 : vector<64x128xf32>
    %c0_23 = arith.constant 0 : index
    %c0_24 = arith.constant 0 : index
    %48 = vector.load %arg4[%c0_23, %c0_24] : memref<64x1xf32, #tpu.memory_space<vmem>>, vector<64x1xf32>
    %c0_25 = arith.constant 0 : index
    %c0_26 = arith.constant 0 : index
    %49 = vector.load %arg5[%c0_25, %c0_26] : memref<64x1xf32, #tpu.memory_space<vmem>>, vector<64x1xf32>
    %50 = arith.mulf %48, %49 : vector<64x1xf32>
    %51 = arith.maximumf %32, %37 : vector<64x128xf32>
    %52 = arith.maximumf %51, %42 : vector<64x128xf32>
    %53 = arith.maximumf %52, %47 : vector<64x128xf32>
    %cst_27 = arith.constant 0.000000e+00 : f32
    %54 = vector.broadcast %cst_27 : f32 to vector<1x128xf32>
    %55 = vector.extract_strided_slice %37 {offsets = [0, 0], sizes = [63, 128], strides = [1, 1]} : vector<64x128xf32> to vector<63x128xf32>
    %56 = tpu.concatenate %54, %55 in 0 : vector<1x128xf32>, vector<63x128xf32> -> vector<64x128xf32>
    %57 = vector.broadcast %49 : vector<64x1xf32> to vector<64x128xf32>
    %58 = arith.mulf %56, %57 : vector<64x128xf32>
    %59 = arith.maximumf %53, %58 : vector<64x128xf32>
    %cst_28 = arith.constant 0.000000e+00 : f32
    %60 = vector.broadcast %cst_28 : f32 to vector<1x128xf32>
    %61 = vector.extract_strided_slice %47 {offsets = [0, 0], sizes = [63, 128], strides = [1, 1]} : vector<64x128xf32> to vector<63x128xf32>
    %62 = tpu.concatenate %60, %61 in 0 : vector<1x128xf32>, vector<63x128xf32> -> vector<64x128xf32>
    %63 = vector.broadcast %49 : vector<64x1xf32> to vector<64x128xf32>
    %64 = arith.mulf %62, %63 : vector<64x128xf32>
    %65 = arith.maximumf %59, %64 : vector<64x128xf32>
    %cst_29 = arith.constant 0.000000e+00 : f32
    %66 = vector.broadcast %cst_29 : f32 to vector<5x128xf32>
    %67 = vector.extract_strided_slice %42 {offsets = [0, 0], sizes = [59, 128], strides = [1, 1]} : vector<64x128xf32> to vector<59x128xf32>
    %68 = tpu.concatenate %66, %67 in 0 : vector<5x128xf32>, vector<59x128xf32> -> vector<64x128xf32>
    %69 = vector.broadcast %48 : vector<64x1xf32> to vector<64x128xf32>
    %70 = arith.mulf %68, %69 : vector<64x128xf32>
    %71 = arith.maximumf %65, %70 : vector<64x128xf32>
    %cst_30 = arith.constant 0.000000e+00 : f32
    %72 = vector.broadcast %cst_30 : f32 to vector<5x128xf32>
    %73 = vector.extract_strided_slice %47 {offsets = [0, 0], sizes = [59, 128], strides = [1, 1]} : vector<64x128xf32> to vector<59x128xf32>
    %74 = tpu.concatenate %72, %73 in 0 : vector<5x128xf32>, vector<59x128xf32> -> vector<64x128xf32>
    %75 = vector.broadcast %48 : vector<64x1xf32> to vector<64x128xf32>
    %76 = arith.mulf %74, %75 : vector<64x128xf32>
    %77 = arith.maximumf %71, %76 : vector<64x128xf32>
    %cst_31 = arith.constant 0.000000e+00 : f32
    %78 = vector.broadcast %cst_31 : f32 to vector<6x128xf32>
    %79 = vector.extract_strided_slice %47 {offsets = [0, 0], sizes = [58, 128], strides = [1, 1]} : vector<64x128xf32> to vector<58x128xf32>
    %80 = tpu.concatenate %78, %79 in 0 : vector<6x128xf32>, vector<58x128xf32> -> vector<64x128xf32>
    %81 = vector.broadcast %50 : vector<64x1xf32> to vector<64x128xf32>
    %82 = arith.mulf %80, %81 : vector<64x128xf32>
    %83 = arith.maximumf %77, %82 : vector<64x128xf32>
    %c0_32 = arith.constant 0 : index
    %c0_33 = arith.constant 0 : index
    %84 = vector.load %arg6[%c0_32, %c0_33] : memref<64x128xf32, #tpu.memory_space<vmem>>, vector<64x128xf32>
    tpu.vector_store %arg6[%c0_32, %c0_33], %83 {strides = array<i32>} : memref<64x128xf32, #tpu.memory_space<vmem>>, vector<64x128xf32>,
    return
  }
  func.func @transform_0(%arg0: i32) -> (i32, i32) {
    %c0_i32 = arith.constant 0 : i32
    %c0_i32_0 = arith.constant 0 : i32
    return %arg0, %c0_i32 : i32, i32
  }
  func.func @transform_1(%arg0: i32) -> (i32, i32, i32) {
    %c0_i32 = arith.constant 0 : i32
    %c0_i32_0 = arith.constant 0 : i32
    %c0_i32_1 = arith.constant 0 : i32
    %c0_i32_2 = arith.constant 0 : i32
    return %c0_i32, %c0_i32_0, %c0_i32_1 : i32, i32, i32
  }
  func.func @transform_2(%arg0: i32) -> (i32, i32) {
    %c0_i32 = arith.constant 0 : i32
    %c0_i32_0 = arith.constant 0 : i32
    %c0_i32_1 = arith.constant 0 : i32
    return %c0_i32, %c0_i32_0 : i32, i32
  }
  func.func @transform_3(%arg0: i32) -> (i32, i32) {
    %c0_i32 = arith.constant 0 : i32
    %c0_i32_0 = arith.constant 0 : i32
    return %arg0, %c0_i32 : i32, i32
  }
  func.func @transform_4(%arg0: i32) -> (i32, i32) {
    %c0_i32 = arith.constant 0 : i32
    %c0_i32_0 = arith.constant 0 : i32
    return %arg0, %c0_i32 : i32, i32
  }
  func.func @transform_5(%arg0: i32) -> (i32, i32) {
    %c0_i32 = arith.constant 0 : i32
    %c0_i32_0 = arith.constant 0 : i32
    return %arg0, %c0_i32 : i32, i32
  }
}

</mosaic_0001>

<llo_original>
// kernel: tpu_custom_call.1
$region0: #{tpu_custom_call.1}
  #allocation0 [shape = 'u32[]', space=smem, size = 0x4, offset = 0x4, fixed_abs, tag = 'smem constant byte address 0x4 - core index']
  #allocation1 [shape = 'u32[144,128]{1,0:T(1,128)}', space=vmem, size = 0x12000, scoped, tag = 'internal scratch']
  %s0 = inlined_call_operand.vmem [shape: bf16[64,64], index: 0, kind: input, shape index: {}]
  %s1 = inlined_call_operand.hbm [shape: bf16[4,64,512], index: 1, kind: input, shape index: {}]
  %s2 = inlined_call_operand.vmem [shape: f32[1,128], index: 2, kind: input, shape index: {}]
  %s3 = inlined_call_operand.vmem [shape: f32[64,1], index: 3, kind: input, shape index: {}]
  %s4 = inlined_call_operand.vmem [shape: f32[64,1], index: 4, kind: input, shape index: {}]
  %s5 = inlined_call_operand.hbm [shape: f32[64,128], index: 5, kind: output, shape index: {}]
  %s6 = sld [smem:[#allocation0]]
  $region34: #{tpu_custom_call.1} parent=0
    _
  %s8 = ssub.s32 1, %s6
  %s9 = scalar_select 0, %s8, %s6
  $region1: #{tpu_custom_call.1} parent=0
    #allocation2 [shape = 'u8[262144]{0}', space=vmem, size = 0x40000, scoped, tag = 'input window, operand 1, single buffered']
    #allocation3 [shape = 's32[1]{0}', space=sflag, size = 0x4, scoped, tag = 'scoped memory for tpu_custom_call.1']
    #allocation4 [shape = 's32[1]{0}', space=sflag, size = 0x4, scoped, tag = 'scoped memory for tpu_custom_call.1']
    #allocation5 [shape = 'u8[32768]{0}', space=vmem, size = 0x8000, scoped, tag = 'output window, operand 0, single buffered']
    %10 = vsyncpa [#allocation3], 0
    %11 = vsyncpa [#allocation4], 0
    // Predicated region
    $region2: #{tpu_custom_call.1} parent=1 // pred_check
      _
    $region3: #{tpu_custom_call.1} parent=1 // pred_check_branch
      %13 = sbr.rel (0) target = $region5
    $region4: #{tpu_custom_call.1} parent=1 // pred_region
      _
    $region5: #{tpu_custom_call.1} parent=1 // pred_fallthru
      _
    // Predicated region
    $region6: #{tpu_custom_call.1} parent=1 // pred_check
      _
    $region7: #{tpu_custom_call.1} parent=1 // pred_check_branch
      %15 = sbr.rel (0) target = $region9
    $region8: #{tpu_custom_call.1} parent=1 // pred_region
      %s17 = ssub.s32 8192, 8192
      %18 = vsyncadd [#allocation3], %s17
      %s19 = sshll.u32 [#allocation2], 4
      %s20 = int_to_ptr.vmem [resolvable:$true] %s19
      %25 = dma.hbm_to_vmem [thread:$0]  %s1, 8192, %s20, [#allocation3], 256, 256, 16
    $region9: #{tpu_custom_call.1} parent=1 // pred_fallthru
      _
    // Predicated region
    $region10: #{tpu_custom_call.1} parent=1 // pred_check
      _
    $region11: #{tpu_custom_call.1} parent=1 // pred_check_branch
      %27 = sbr.rel (0) target = $region13
    $region12: #{tpu_custom_call.1} parent=1 // pred_region
      _
    $region13: #{tpu_custom_call.1} parent=1 // pred_fallthru
      _
    // Predicated region
    $region14: #{tpu_custom_call.1} parent=1 // pred_check
      _
    $region15: #{tpu_custom_call.1} parent=1 // pred_check_branch
      %29 = sbr.rel (0) target = $region17
    $region16: #{tpu_custom_call.1} parent=1 // pred_region
      _
    $region17: #{tpu_custom_call.1} parent=1 // pred_fallthru
      _
    // Predicated region
    $region18: #{tpu_custom_call.1} parent=1 // pred_check
      _
    $region19: #{tpu_custom_call.1} parent=1 // pred_check_branch
      %31 = sbr.rel (0) target = $region21
    $region20: #{tpu_custom_call.1} parent=1 // pred_region
      _
    $region21: #{tpu_custom_call.1} parent=1 // pred_fallthru
      _
    // Predicated region
    $region22: #{tpu_custom_call.1} parent=1 // pred_check
      _
    $region23: #{tpu_custom_call.1} parent=1 // pred_check_branch
      %33 = sbr.rel (0) target = $region25
    $region24: #{tpu_custom_call.1} parent=1 // pred_region
      %34 = dma.done [#allocation3], 8192
    $region25: #{tpu_custom_call.1} parent=1 // pred_fallthru
      _
    %v36 = vld [vmem:[%s0] sm:$0xf]
    %v37 = vld [vmem:[%s0 + $0x4] sm:$0xf]
    %v38 = vld [vmem:[%s0 + $0x8] sm:$0xf]
    %v39 = vld [vmem:[%s0 + $0xc] sm:$0xf]
    %v40 = vld [vmem:[%s0 + $0x10] sm:$0xf]
    %v41 = vld [vmem:[%s0 + $0x14] sm:$0xf]
    %v42 = vld [vmem:[%s0 + $0x18] sm:$0xf]
    %v43 = vld [vmem:[%s0 + $0x1c] sm:$0xf]
    %v44 = vld [vmem:[#allocation2] sm:$0xff]
    %v45 = vld [vmem:[#allocation2 + $0x8] sm:$0xff]
    %v46 = vld [vmem:[#allocation2 + $0x10] sm:$0xff]
    %v47 = vld [vmem:[#allocation2 + $0x18] sm:$0xff]
    %v48 = vld [vmem:[#allocation2 + $0x20] sm:$0xff]
    %v49 = vld [vmem:[#allocation2 + $0x28] sm:$0xff]
    %v50 = vld [vmem:[#allocation2 + $0x30] sm:$0xff]
    %v51 = vld [vmem:[#allocation2 + $0x38] sm:$0xff]
    %v52 = vld [vmem:[#allocation2 + $0x40] sm:$0xff]
    %v53 = vld [vmem:[#allocation2 + $0x48] sm:$0xff]
    %v54 = vld [vmem:[#allocation2 + $0x50] sm:$0xff]
    %v55 = vld [vmem:[#allocation2 + $0x58] sm:$0xff]
    %v56 = vld [vmem:[#allocation2 + $0x60] sm:$0xff]
    %v57 = vld [vmem:[#allocation2 + $0x68] sm:$0xff]
    %v58 = vld [vmem:[#allocation2 + $0x70] sm:$0xff]
    %v59 = vld [vmem:[#allocation2 + $0x78] sm:$0xff]
    %s60 = scalar_lea.vmem [#allocation2], 128
    %v61 = vld [vmem:[%s60] sm:$0xff]
    %v62 = vld [vmem:[%s60 + $0x8] sm:$0xff]
    %v63 = vld [vmem:[%s60 + $0x10] sm:$0xff]
    %v64 = vld [vmem:[%s60 + $0x18] sm:$0xff]
    %v65 = vld [vmem:[%s60 + $0x20] sm:$0xff]
    %v66 = vld [vmem:[%s60 + $0x28] sm:$0xff]
    %v67 = vld [vmem:[%s60 + $0x30] sm:$0xff]
    %v68 = vld [vmem:[%s60 + $0x38] sm:$0xff]
    %v69 = vld [vmem:[%s60 + $0x40] sm:$0xff]
    %v70 = vld [vmem:[%s60 + $0x48] sm:$0xff]
    %v71 = vld [vmem:[%s60 + $0x50] sm:$0xff]
    %v72 = vld [vmem:[%s60 + $0x58] sm:$0xff]
    %v73 = vld [vmem:[%s60 + $0x60] sm:$0xff]
    %v74 = vld [vmem:[%s60 + $0x68] sm:$0xff]
    %v75 = vld [vmem:[%s60 + $0x70] sm:$0xff]
    %v76 = vld [vmem:[%s60 + $0x78] sm:$0xff]
    %v85 = vunpack.c.l.b16 %v36
    %v86 = vunpack.c.l.b16 %v37
    %v87 = vunpack.c.l.b16 %v38
    %v88 = vunpack.c.l.b16 %v39
    %v89 = vunpack.c.l.b16 %v40
    %v90 = vunpack.c.l.b16 %v41
    %v91 = vunpack.c.l.b16 %v42
    %v92 = vunpack.c.l.b16 %v43
    %v93 = vpack.c.b16 %v86, %v85
    %v94 = vpack.c.b16 %v88, %v87
    %v95 = vpack.c.b16 %v90, %v89
    %v96 = vpack.c.b16 %v92, %v91
    %v113 = vunpack.c.l.b16 %v61
    %v114 = vunpack.c.h.b16 %v61
    %v115 = vunpack.c.l.b16 %v62
    %v116 = vunpack.c.h.b16 %v62
    %v117 = vunpack.c.l.b16 %v63
    %v118 = vunpack.c.h.b16 %v63
    %v119 = vunpack.c.l.b16 %v64
    %v120 = vunpack.c.h.b16 %v64
    %v121 = vunpack.c.l.b16 %v65
    %v122 = vunpack.c.h.b16 %v65
    %v123 = vunpack.c.l.b16 %v66
    %v124 = vunpack.c.h.b16 %v66
    %v125 = vunpack.c.l.b16 %v67
    %v126 = vunpack.c.h.b16 %v67
    %v127 = vunpack.c.l.b16 %v68
    %v128 = vunpack.c.h.b16 %v68
    %v129 = vunpack.c.l.b16 %v69
    %v130 = vunpack.c.h.b16 %v69
    %v131 = vunpack.c.l.b16 %v70
    %v132 = vunpack.c.h.b16 %v70
    %v133 = vunpack.c.l.b16 %v71
    %v134 = vunpack.c.h.b16 %v71
    %v135 = vunpack.c.l.b16 %v72
    %v136 = vunpack.c.h.b16 %v72
    %v137 = vunpack.c.l.b16 %v73
    %v138 = vunpack.c.h.b16 %v73
    %v139 = vunpack.c.l.b16 %v74
    %v140 = vunpack.c.h.b16 %v74
    %v141 = vunpack.c.l.b16 %v75
    %v142 = vunpack.c.h.b16 %v75
    %v143 = vunpack.c.l.b16 %v76
    %v144 = vunpack.c.h.b16 %v76
    %v145 = vpack.c.b16 %v117, %v113
    %v146 = vpack.c.b16 %v118, %v114
    %v147 = vpack.c.b16 %v119, %v115
    %v148 = vpack.c.b16 %v120, %v116
    %v149 = vpack.c.b16 %v125, %v121
    %v150 = vpack.c.b16 %v126, %v122
    %v151 = vpack.c.b16 %v127, %v123
    %v152 = vpack.c.b16 %v128, %v124
    %v153 = vpack.c.b16 %v133, %v129
    %v154 = vpack.c.b16 %v134, %v130
    %v155 = vpack.c.b16 %v135, %v131
    %v156 = vpack.c.b16 %v136, %v132
    %v157 = vpack.c.b16 %v141, %v137
    %v158 = vpack.c.b16 %v142, %v138
    %v159 = vpack.c.b16 %v143, %v139
    %v160 = vpack.c.b16 %v144, %v140
    %vm177 = vcmask 523264
    %v179 = vsel %vm177, %v93, 0
    %v182 = vsel %vm177, %v94, 0
    %v185 = vsel %vm177, %v95, 0
    %v188 = vsel %vm177, %v96, 0
    %190 = vmatprep.subr.bf16.mxu0 %v146
    %191 = vmatpush1.bf16.msra.mxu0 %v145
    %192 = vmatprep.subr.bf16.mxu0 %v150
    %193 = vmatpush1.bf16.msra.mxu0 %v149
    %194 = vmatprep.subr.bf16.mxu0 %v154
    %195 = vmatpush1.bf16.msra.mxu0 %v153
    %196 = vmatprep.subr.bf16.mxu0 %v158
    %197 = vmatpush1.bf16.msra.mxu0 %v157
    %198 = vmatprep.subr.bf16.mxu0 0
    %199 = vmatpush1.bf16.msra.mxu0 0
    %200 = vmatprep.subr.bf16.mxu0 0
    %201 = vmatpush1.bf16.msra.mxu0 0
    %202 = vmatprep.subr.bf16.mxu0 0
    %203 = vmatpush1.bf16.msra.mxu0 0
    %204 = vmatprep.subr.bf16.mxu0 0
    %205 = vmatpush1.bf16.msra.mxu0 0
    %206 = vmatprep.subr.bf16.mxu0 0
    %207 = vmatpush1.bf16.msra.mxu0 0
    %208 = vmatprep.subr.bf16.mxu0 0
    %209 = vmatpush1.bf16.msra.mxu0 0
    %210 = vmatprep.subr.bf16.mxu0 0
    %211 = vmatpush1.bf16.msra.mxu0 0
    %212 = vmatprep.subr.bf16.mxu0 0
    %213 = vmatpush1.bf16.msra.mxu0 0
    %214 = vmatprep.subr.bf16.mxu0 0
    %215 = vmatpush1.bf16.msra.mxu0 0
    %216 = vmatprep.subr.bf16.mxu0 0
    %217 = vmatpush1.bf16.msra.mxu0 0
    %218 = vmatprep.subr.bf16.mxu0 0
    %219 = vmatpush1.bf16.msra.mxu0 0
    %220 = vmatprep.subr.bf16.mxu0 0
    %221 = vmatpush1.bf16.msra.mxu0 0
    %222 = vmatprep.mubr.bf16.mxu0 0
    %223 = vmatmul.mubr.bf16.gmra.mrb[0].mxu0 %v179
    %v224 = vpop.f32.mrb[0].mxu0
    %v225 = vadd.f32 0.0, %v224
    %v226 = vpop.f32.mrb[0].mxu0
    %v227 = vadd.f32 0.0, %v226
    %v228 = vpop.f32.mrb[0].mxu0
    %v229 = vadd.f32 0.0, %v228
    %v230 = vpop.f32.mrb[0].mxu0
    %v231 = vadd.f32 0.0, %v230
    %232 = vmatprep.mubr.bf16.mxu0 0
    %233 = vmatmul.mubr.bf16.gmra.mrb[0].mxu0 %v182
    %v234 = vpop.f32.mrb[0].mxu0
    %v235 = vadd.f32 0.0, %v234
    %v236 = vpop.f32.mrb[0].mxu0
    %v237 = vadd.f32 0.0, %v236
    %v238 = vpop.f32.mrb[0].mxu0
    %v239 = vadd.f32 0.0, %v238
    %v240 = vpop.f32.mrb[0].mxu0
    %v241 = vadd.f32 0.0, %v240
    %242 = vmatprep.mubr.bf16.mxu0 0
    %243 = vmatmul.mubr.bf16.gmra.mrb[0].mxu0 %v185
    %v244 = vpop.f32.mrb[0].mxu0
    %v245 = vadd.f32 0.0, %v244
    %v246 = vpop.f32.mrb[0].mxu0
    %v247 = vadd.f32 0.0, %v246
    %v248 = vpop.f32.mrb[0].mxu0
    %v249 = vadd.f32 0.0, %v248
    %v250 = vpop.f32.mrb[0].mxu0
    %v251 = vadd.f32 0.0, %v250
    %252 = vmatprep.mubr.bf16.mxu0 0
    %253 = vmatmul.mubr.bf16.gmra.mrb[0].mxu0 %v188
    %v254 = vpop.f32.mrb[0].mxu0
    %v255 = vadd.f32 0.0, %v254
    %v256 = vpop.f32.mrb[0].mxu0
    %v257 = vadd.f32 0.0, %v256
    %v258 = vpop.f32.mrb[0].mxu0
    %v259 = vadd.f32 0.0, %v258
    %v260 = vpop.f32.mrb[0].mxu0
    %v261 = vadd.f32 0.0, %v260
    %262 = vdwg.mxu0
    %263 = vmatprep.subr.bf16.mxu0 %v148
    %264 = vmatpush1.bf16.msra.mxu0 %v147
    %265 = vmatprep.subr.bf16.mxu0 %v152
    %266 = vmatpush1.bf16.msra.mxu0 %v151
    %267 = vmatprep.subr.bf16.mxu0 %v156
    %268 = vmatpush1.bf16.msra.mxu0 %v155
    %269 = vmatprep.subr.bf16.mxu0 %v160
    %270 = vmatpush1.bf16.msra.mxu0 %v159
    %271 = vmatprep.subr.bf16.mxu0 0
    %272 = vmatpush1.bf16.msra.mxu0 0
    %273 = vmatprep.subr.bf16.mxu0 0
    %274 = vmatpush1.bf16.msra.mxu0 0
    %275 = vmatprep.subr.bf16.mxu0 0
    %276 = vmatpush1.bf16.msra.mxu0 0
    %277 = vmatprep.subr.bf16.mxu0 0
    %278 = vmatpush1.bf16.msra.mxu0 0
    %279 = vmatprep.subr.bf16.mxu0 0
    %280 = vmatpush1.bf16.msra.mxu0 0
    %281 = vmatprep.subr.bf16.mxu0 0
    %282 = vmatpush1.bf16.msra.mxu0 0
    %283 = vmatprep.subr.bf16.mxu0 0
    %284 = vmatpush1.bf16.msra.mxu0 0
    %285 = vmatprep.subr.bf16.mxu0 0
    %286 = vmatpush1.bf16.msra.mxu0 0
    %287 = vmatprep.subr.bf16.mxu0 0
    %288 = vmatpush1.bf16.msra.mxu0 0
    %289 = vmatprep.subr.bf16.mxu0 0
    %290 = vmatpush1.bf16.msra.mxu0 0
    %291 = vmatprep.subr.bf16.mxu0 0
    %292 = vmatpush1.bf16.msra.mxu0 0
    %293 = vmatprep.subr.bf16.mxu0 0
    %294 = vmatpush1.bf16.msra.mxu0 0
    %295 = vmatprep.mubr.bf16.mxu0 0
    %296 = vmatmul.mubr.bf16.gmra.mrb[0].mxu0 %v179
    %v297 = vpop.f32.mrb[0].mxu0
    %v298 = vadd.f32 0.0, %v297
    %v299 = vpop.f32.mrb[0].mxu0
    %v300 = vadd.f32 0.0, %v299
    %v301 = vpop.f32.mrb[0].mxu0
    %v302 = vadd.f32 0.0, %v301
    %v303 = vpop.f32.mrb[0].mxu0
    %v304 = vadd.f32 0.0, %v303
    %305 = vmatprep.mubr.bf16.mxu0 0
    %306 = vmatmul.mubr.bf16.gmra.mrb[0].mxu0 %v182
    %v307 = vpop.f32.mrb[0].mxu0
    %v308 = vadd.f32 0.0, %v307
    %v309 = vpop.f32.mrb[0].mxu0
    %v310 = vadd.f32 0.0, %v309
    %v311 = vpop.f32.mrb[0].mxu0
    %v312 = vadd.f32 0.0, %v311
    %v313 = vpop.f32.mrb[0].mxu0
    %v314 = vadd.f32 0.0, %v313
    %315 = vmatprep.mubr.bf16.mxu0 0
    %316 = vmatmul.mubr.bf16.gmra.mrb[0].mxu0 %v185
    %v317 = vpop.f32.mrb[0].mxu0
    %v318 = vadd.f32 0.0, %v317
    %v319 = vpop.f32.mrb[0].mxu0
    %v320 = vadd.f32 0.0, %v319
    %v321 = vpop.f32.mrb[0].mxu0
    %v322 = vadd.f32 0.0, %v321
    %v323 = vpop.f32.mrb[0].mxu0
    %v324 = vadd.f32 0.0, %v323
    %325 = vmatprep.mubr.bf16.mxu0 0
    %326 = vmatmul.mubr.bf16.gmra.mrb[0].mxu0 %v188
    %v327 = vpop.f32.mrb[0].mxu0
    %v328 = vadd.f32 0.0, %v327
    %v329 = vpop.f32.mrb[0].mxu0
    %v330 = vadd.f32 0.0, %v329
    %v331 = vpop.f32.mrb[0].mxu0
    %v332 = vadd.f32 0.0, %v331
    %v333 = vpop.f32.mrb[0].mxu0
    %v334 = vadd.f32 0.0, %v333
    %335 = vdwg.mxu0
    %vm368 = vcmask 1046528
    %v369 = vrot.slane %v225, 1
    %v370 = vrot.slane %v229, 1
    %v371 = vsel %vm368, %v369, %v370
    %v372 = vrot.slane %v227, 1
    %v373 = vrot.slane %v231, 1
    %v374 = vsel %vm368, %v372, %v373
    %v375 = vrot.slane %v298, 1
    %v376 = vrot.slane %v302, 1
    %v377 = vsel %vm368, %v375, %v376
    %v378 = vrot.slane %v300, 1
    %v379 = vrot.slane %v304, 1
    %v380 = vsel %vm368, %v378, %v379
    %v381 = vrot.slane %v235, 1
    %v382 = vsel %vm368, %v370, %v381
    %v383 = vrot.slane %v237, 1
    %v384 = vsel %vm368, %v373, %v383
    %v385 = vrot.slane %v308, 1
    %v386 = vsel %vm368, %v376, %v385
    %v387 = vrot.slane %v310, 1
    %v388 = vsel %vm368, %v379, %v387
    %v389 = vrot.slane %v239, 1
    %v390 = vsel %vm368, %v381, %v389
    %v391 = vrot.slane %v241, 1
    %v392 = vsel %vm368, %v383, %v391
    %v393 = vrot.slane %v312, 1
    %v394 = vsel %vm368, %v385, %v393
    %v395 = vrot.slane %v314, 1
    %v396 = vsel %vm368, %v387, %v395
    %v397 = vrot.slane %v245, 1
    %v398 = vsel %vm368, %v389, %v397
    %v399 = vrot.slane %v247, 1
    %v400 = vsel %vm368, %v391, %v399
    %v401 = vrot.slane %v318, 1
    %v402 = vsel %vm368, %v393, %v401
    %v403 = vrot.slane %v320, 1
    %v404 = vsel %vm368, %v395, %v403
    %v405 = vrot.slane %v249, 1
    %v406 = vsel %vm368, %v397, %v405
    %v407 = vrot.slane %v251, 1
    %v408 = vsel %vm368, %v399, %v407
    %v409 = vrot.slane %v322, 1
    %v410 = vsel %vm368, %v401, %v409
    %v411 = vrot.slane %v324, 1
    %v412 = vsel %vm368, %v403, %v411
    %v413 = vrot.slane %v255, 1
    %v414 = vsel %vm368, %v405, %v413
    %v415 = vrot.slane %v257, 1
    %v416 = vsel %vm368, %v407, %v415
    %v417 = vrot.slane %v328, 1
    %v418 = vsel %vm368, %v409, %v417
    %v419 = vrot.slane %v330, 1
    %v420 = vsel %vm368, %v411, %v419
    %v421 = vrot.slane %v259, 1
    %v422 = vsel %vm368, %v413, %v421
    %v423 = vrot.slane %v261, 1
    %v424 = vsel %vm368, %v415, %v423
    %v425 = vrot.slane %v332, 1
    %v426 = vsel %vm368, %v417, %v425
    %v427 = vrot.slane %v334, 1
    %v428 = vsel %vm368, %v419, %v427
    %v461 = vsel %vm368, %v421, 0.0
    %v462 = vsel %vm368, %v423, 0.0
    %v463 = vsel %vm368, %v425, 0.0
    %v464 = vsel %vm368, %v427, 0.0
    %v481 = vunpack.c.l.b16 %v44
    %v482 = vunpack.c.h.b16 %v44
    %v483 = vunpack.c.l.b16 %v45
    %v484 = vunpack.c.h.b16 %v45
    %v485 = vunpack.c.l.b16 %v46
    %v486 = vunpack.c.h.b16 %v46
    %v487 = vunpack.c.l.b16 %v47
    %v488 = vunpack.c.h.b16 %v47
    %v489 = vunpack.c.l.b16 %v48
    %v490 = vunpack.c.h.b16 %v48
    %v491 = vunpack.c.l.b16 %v49
    %v492 = vunpack.c.h.b16 %v49
    %v493 = vunpack.c.l.b16 %v50
    %v494 = vunpack.c.h.b16 %v50
    %v495 = vunpack.c.l.b16 %v51
    %v496 = vunpack.c.h.b16 %v51
    %v497 = vunpack.c.l.b16 %v52
    %v498 = vunpack.c.h.b16 %v52
    %v499 = vunpack.c.l.b16 %v53
    %v500 = vunpack.c.h.b16 %v53
    %v501 = vunpack.c.l.b16 %v54
    %v502 = vunpack.c.h.b16 %v54
    %v503 = vunpack.c.l.b16 %v55
    %v504 = vunpack.c.h.b16 %v55
    %v505 = vunpack.c.l.b16 %v56
    %v506 = vunpack.c.h.b16 %v56
    %v507 = vunpack.c.l.b16 %v57
    %v508 = vunpack.c.h.b16 %v57
    %v509 = vunpack.c.l.b16 %v58
    %v510 = vunpack.c.h.b16 %v58
    %v511 = vunpack.c.l.b16 %v59
    %v512 = vunpack.c.h.b16 %v59
    %v513 = vpack.c.b16 %v485, %v481
    %v514 = vpack.c.b16 %v486, %v482
    %v515 = vpack.c.b16 %v487, %v483
    %v516 = vpack.c.b16 %v488, %v484
    %v517 = vpack.c.b16 %v493, %v489
    %v518 = vpack.c.b16 %v494, %v490
    %v519 = vpack.c.b16 %v495, %v491
    %v520 = vpack.c.b16 %v496, %v492
    %v521 = vpack.c.b16 %v501, %v497
    %v522 = vpack.c.b16 %v502, %v498
    %v523 = vpack.c.b16 %v503, %v499
    %v524 = vpack.c.b16 %v504, %v500
    %v525 = vpack.c.b16 %v509, %v505
    %v526 = vpack.c.b16 %v510, %v506
    %v527 = vpack.c.b16 %v511, %v507
    %v528 = vpack.c.b16 %v512, %v508
    %545 = vmatprep.subr.bf16.mxu0 %v514
    %546 = vmatpush1.bf16.msra.mxu0 %v513
    %547 = vmatprep.subr.bf16.mxu0 %v518
    %548 = vmatpush1.bf16.msra.mxu0 %v517
    %549 = vmatprep.subr.bf16.mxu0 %v522
    %550 = vmatpush1.bf16.msra.mxu0 %v521
    %551 = vmatprep.subr.bf16.mxu0 %v526
    %552 = vmatpush1.bf16.msra.mxu0 %v525
    %553 = vmatprep.subr.bf16.mxu0 0
    %554 = vmatpush1.bf16.msra.mxu0 0
    %555 = vmatprep.subr.bf16.mxu0 0
    %556 = vmatpush1.bf16.msra.mxu0 0
    %557 = vmatprep.subr.bf16.mxu0 0
    %558 = vmatpush1.bf16.msra.mxu0 0
    %559 = vmatprep.subr.bf16.mxu0 0
    %560 = vmatpush1.bf16.msra.mxu0 0
    %561 = vmatprep.subr.bf16.mxu0 0
    %562 = vmatpush1.bf16.msra.mxu0 0
    %563 = vmatprep.subr.bf16.mxu0 0
    %564 = vmatpush1.bf16.msra.mxu0 0
    %565 = vmatprep.subr.bf16.mxu0 0
    %566 = vmatpush1.bf16.msra.mxu0 0
    %567 = vmatprep.subr.bf16.mxu0 0
    %568 = vmatpush1.bf16.msra.mxu0 0
    %569 = vmatprep.subr.bf16.mxu0 0
    %570 = vmatpush1.bf16.msra.mxu0 0
    %571 = vmatprep.subr.bf16.mxu0 0
    %572 = vmatpush1.bf16.msra.mxu0 0
    %573 = vmatprep.subr.bf16.mxu0 0
    %574 = vmatpush1.bf16.msra.mxu0 0
    %575 = vmatprep.subr.bf16.mxu0 0
    %576 = vmatpush1.bf16.msra.mxu0 0
    %577 = vmatprep.mubr.bf16.mxu0 0
    %578 = vmatmul.mubr.bf16.gmra.mrb[0].mxu0 %v179
    %v579 = vpop.f32.mrb[0].mxu0
    %v580 = vadd.f32 %v371, %v579
    %v581 = vpop.f32.mrb[0].mxu0
    %v582 = vadd.f32 %v374, %v581
    %v583 = vpop.f32.mrb[0].mxu0
    %v584 = vadd.f32 %v382, %v583
    %v585 = vpop.f32.mrb[0].mxu0
    %v586 = vadd.f32 %v384, %v585
    %587 = vmatprep.mubr.bf16.mxu0 0
    %588 = vmatmul.mubr.bf16.gmra.mrb[0].mxu0 %v182
    %v589 = vpop.f32.mrb[0].mxu0
    %v590 = vadd.f32 %v390, %v589
    %v591 = vpop.f32.mrb[0].mxu0
    %v592 = vadd.f32 %v392, %v591
    %v593 = vpop.f32.mrb[0].mxu0
    %v594 = vadd.f32 %v398, %v593
    %v595 = vpop.f32.mrb[0].mxu0
    %v596 = vadd.f32 %v400, %v595
    %597 = vmatprep.mubr.bf16.mxu0 0
    %598 = vmatmul.mubr.bf16.gmra.mrb[0].mxu0 %v185
    %v599 = vpop.f32.mrb[0].mxu0
    %v600 = vadd.f32 %v406, %v599
    %v601 = vpop.f32.mrb[0].mxu0
    %v602 = vadd.f32 %v408, %v601
    %v603 = vpop.f32.mrb[0].mxu0
    %v604 = vadd.f32 %v414, %v603
    %v605 = vpop.f32.mrb[0].mxu0
    %v606 = vadd.f32 %v416, %v605
    %607 = vmatprep.mubr.bf16.mxu0 0
    %608 = vmatmul.mubr.bf16.gmra.mrb[0].mxu0 %v188
    %v609 = vpop.f32.mrb[0].mxu0
    %v610 = vadd.f32 %v422, %v609
    %v611 = vpop.f32.mrb[0].mxu0
    %v612 = vadd.f32 %v424, %v611
    %v613 = vpop.f32.mrb[0].mxu0
    %v614 = vadd.f32 %v461, %v613
    %v615 = vpop.f32.mrb[0].mxu0
    %v616 = vadd.f32 %v462, %v615
    %617 = vdwg.mxu0
    %618 = vmatprep.subr.bf16.mxu0 %v516
    %619 = vmatpush1.bf16.msra.mxu0 %v515
    %620 = vmatprep.subr.bf16.mxu0 %v520
    %621 = vmatpush1.bf16.msra.mxu0 %v519
    %622 = vmatprep.subr.bf16.mxu0 %v524
    %623 = vmatpush1.bf16.msra.mxu0 %v523
    %624 = vmatprep.subr.bf16.mxu0 %v528
    %625 = vmatpush1.bf16.msra.mxu0 %v527
    %626 = vmatprep.subr.bf16.mxu0 0
    %627 = vmatpush1.bf16.msra.mxu0 0
    %628 = vmatprep.subr.bf16.mxu0 0
    %629 = vmatpush1.bf16.msra.mxu0 0
    %630 = vmatprep.subr.bf16.mxu0 0
    %631 = vmatpush1.bf16.msra.mxu0 0
    %632 = vmatprep.subr.bf16.mxu0 0
    %633 = vmatpush1.bf16.msra.mxu0 0
    %634 = vmatprep.subr.bf16.mxu0 0
    %635 = vmatpush1.bf16.msra.mxu0 0
    %636 = vmatprep.subr.bf16.mxu0 0
    %637 = vmatpush1.bf16.msra.mxu0 0
    %638 = vmatprep.subr.bf16.mxu0 0
    %639 = vmatpush1.bf16.msra.mxu0 0
    %640 = vmatprep.subr.bf16.mxu0 0
    %641 = vmatpush1.bf16.msra.mxu0 0
    %642 = vmatprep.subr.bf16.mxu0 0
    %643 = vmatpush1.bf16.msra.mxu0 0
    %644 = vmatprep.subr.bf16.mxu0 0
    %645 = vmatpush1.bf16.msra.mxu0 0
    %646 = vmatprep.subr.bf16.mxu0 0
    %647 = vmatpush1.bf16.msra.mxu0 0
    %648 = vmatprep.subr.bf16.mxu0 0
    %649 = vmatpush1.bf16.msra.mxu0 0
    %650 = vmatprep.mubr.bf16.mxu0 0
    %651 = vmatmul.mubr.bf16.gmra.mrb[0].mxu0 %v179
    %v652 = vpop.f32.mrb[0].mxu0
    %v653 = vadd.f32 %v377, %v652
    %v654 = vpop.f32.mrb[0].mxu0
    %v655 = vadd.f32 %v380, %v654
    %v656 = vpop.f32.mrb[0].mxu0
    %v657 = vadd.f32 %v386, %v656
    %v658 = vpop.f32.mrb[0].mxu0
    %v659 = vadd.f32 %v388, %v658
    %660 = vmatprep.mubr.bf16.mxu0 0
    %661 = vmatmul.mubr.bf16.gmra.mrb[0].mxu0 %v182
    %v662 = vpop.f32.mrb[0].mxu0
    %v663 = vadd.f32 %v394, %v662
    %v664 = vpop.f32.mrb[0].mxu0
    %v665 = vadd.f32 %v396, %v664
    %v666 = vpop.f32.mrb[0].mxu0
    %v667 = vadd.f32 %v402, %v666
    %v668 = vpop.f32.mrb[0].mxu0
    %v669 = vadd.f32 %v404, %v668
    %670 = vmatprep.mubr.bf16.mxu0 0
    %671 = vmatmul.mubr.bf16.gmra.mrb[0].mxu0 %v185
    %v672 = vpop.f32.mrb[0].mxu0
    %v673 = vadd.f32 %v410, %v672
    %v674 = vpop.f32.mrb[0].mxu0
    %v675 = vadd.f32 %v412, %v674
    %v676 = vpop.f32.mrb[0].mxu0
    %v677 = vadd.f32 %v418, %v676
    %v678 = vpop.f32.mrb[0].mxu0
    %v679 = vadd.f32 %v420, %v678
    %680 = vmatprep.mubr.bf16.mxu0 0
    %681 = vmatmul.mubr.bf16.gmra.mrb[0].mxu0 %v188
    %v682 = vpop.f32.mrb[0].mxu0
    %v683 = vadd.f32 %v426, %v682
    %v684 = vpop.f32.mrb[0].mxu0
    %v685 = vadd.f32 %v428, %v684
    %v686 = vpop.f32.mrb[0].mxu0
    %v687 = vadd.f32 %v463, %v686
    %v688 = vpop.f32.mrb[0].mxu0
    %v689 = vadd.f32 %v464, %v688
    %690 = vdwg.mxu0
    %s691 = scalar_lea.vmem [#allocation2], 256
    %v692 = vld [vmem:[%s691] sm:$0xff]
    %v693 = vld [vmem:[%s691 + $0x8] sm:$0xff]
    %v694 = vld [vmem:[%s691 + $0x10] sm:$0xff]
    %v695 = vld [vmem:[%s691 + $0x18] sm:$0xff]
    %v696 = vld [vmem:[%s691 + $0x20] sm:$0xff]
    %v697 = vld [vmem:[%s691 + $0x28] sm:$0xff]
    %v698 = vld [vmem:[%s691 + $0x30] sm:$0xff]
    %v699 = vld [vmem:[%s691 + $0x38] sm:$0xff]
    %v700 = vld [vmem:[%s691 + $0x40] sm:$0xff]
    %v701 = vld [vmem:[%s691 + $0x48] sm:$0xff]
    %v702 = vld [vmem:[%s691 + $0x50] sm:$0xff]
    %v703 = vld [vmem:[%s691 + $0x58] sm:$0xff]
    %v704 = vld [vmem:[%s691 + $0x60] sm:$0xff]
    %v705 = vld [vmem:[%s691 + $0x68] sm:$0xff]
    %v706 = vld [vmem:[%s691 + $0x70] sm:$0xff]
    %v707 = vld [vmem:[%s691 + $0x78] sm:$0xff]
    %v724 = vunpack.c.l.b16 %v692
    %v725 = vunpack.c.h.b16 %v692
    %v726 = vunpack.c.l.b16 %v693
    %v727 = vunpack.c.h.b16 %v693
    %v728 = vunpack.c.l.b16 %v694
    %v729 = vunpack.c.h.b16 %v694
    %v730 = vunpack.c.l.b16 %v695
    %v731 = vunpack.c.h.b16 %v695
    %v732 = vunpack.c.l.b16 %v696
    %v733 = vunpack.c.h.b16 %v696
    %v734 = vunpack.c.l.b16 %v697
    %v735 = vunpack.c.h.b16 %v697
    %v736 = vunpack.c.l.b16 %v698
    %v737 = vunpack.c.h.b16 %v698
    %v738 = vunpack.c.l.b16 %v699
    %v739 = vunpack.c.h.b16 %v699
    %v740 = vunpack.c.l.b16 %v700
    %v741 = vunpack.c.h.b16 %v700
    %v742 = vunpack.c.l.b16 %v701
    %v743 = vunpack.c.h.b16 %v701
    %v744 = vunpack.c.l.b16 %v702
    %v745 = vunpack.c.h.b16 %v702
    %v746 = vunpack.c.l.b16 %v703
    %v747 = vunpack.c.h.b16 %v703
    %v748 = vunpack.c.l.b16 %v704
    %v749 = vunpack.c.h.b16 %v704
    %v750 = vunpack.c.l.b16 %v705
    %v751 = vunpack.c.h.b16 %v705
    %v752 = vunpack.c.l.b16 %v706
    %v753 = vunpack.c.h.b16 %v706
    %v754 = vunpack.c.l.b16 %v707
    %v755 = vunpack.c.h.b16 %v707
    %v756 = vpack.c.b16 %v728, %v724
    %v757 = vpack.c.b16 %v729, %v725
    %v758 = vpack.c.b16 %v730, %v726
    %v759 = vpack.c.b16 %v731, %v727
    %v760 = vpack.c.b16 %v736, %v732
    %v761 = vpack.c.b16 %v737, %v733
    %v762 = vpack.c.b16 %v738, %v734
    %v763 = vpack.c.b16 %v739, %v735
    %v764 = vpack.c.b16 %v744, %v740
    %v765 = vpack.c.b16 %v745, %v741
    %v766 = vpack.c.b16 %v746, %v742
    %v767 = vpack.c.b16 %v747, %v743
    %v768 = vpack.c.b16 %v752, %v748
    %v769 = vpack.c.b16 %v753, %v749
    %v770 = vpack.c.b16 %v754, %v750
    %v771 = vpack.c.b16 %v755, %v751
    %788 = vmatprep.subr.bf16.mxu0 %v757
    %789 = vmatpush1.bf16.msra.mxu0 %v756
    %790 = vmatprep.subr.bf16.mxu0 %v761
    %791 = vmatpush1.bf16.msra.mxu0 %v760
    %792 = vmatprep.subr.bf16.mxu0 %v765
    %793 = vmatpush1.bf16.msra.mxu0 %v764
    %794 = vmatprep.subr.bf16.mxu0 %v769
    %795 = vmatpush1.bf16.msra.mxu0 %v768
    %796 = vmatprep.subr.bf16.mxu0 0
    %797 = vmatpush1.bf16.msra.mxu0 0
    %798 = vmatprep.subr.bf16.mxu0 0
    %799 = vmatpush1.bf16.msra.mxu0 0
    %800 = vmatprep.subr.bf16.mxu0 0
    %801 = vmatpush1.bf16.msra.mxu0 0
    %802 = vmatprep.subr.bf16.mxu0 0
    %803 = vmatpush1.bf16.msra.mxu0 0
    %804 = vmatprep.subr.bf16.mxu0 0
    %805 = vmatpush1.bf16.msra.mxu0 0
    %806 = vmatprep.subr.bf16.mxu0 0
    %807 = vmatpush1.bf16.msra.mxu0 0
    %808 = vmatprep.subr.bf16.mxu0 0
    %809 = vmatpush1.bf16.msra.mxu0 0
    %810 = vmatprep.subr.bf16.mxu0 0
    %811 = vmatpush1.bf16.msra.mxu0 0
    %812 = vmatprep.subr.bf16.mxu0 0
    %813 = vmatpush1.bf16.msra.mxu0 0
    %814 = vmatprep.subr.bf16.mxu0 0
    %815 = vmatpush1.bf16.msra.mxu0 0
    %816 = vmatprep.subr.bf16.mxu0 0
    %817 = vmatpush1.bf16.msra.mxu0 0
    %818 = vmatprep.subr.bf16.mxu0 0
    %819 = vmatpush1.bf16.msra.mxu0 0
    %820 = vmatprep.mubr.bf16.mxu0 0
    %821 = vmatmul.mubr.bf16.gmra.mrb[0].mxu0 %v179
    %v822 = vpop.f32.mrb[0].mxu0
    %v823 = vadd.f32 0.0, %v822
    %v824 = vpop.f32.mrb[0].mxu0
    %v825 = vadd.f32 0.0, %v824
    %v826 = vpop.f32.mrb[0].mxu0
    %v827 = vadd.f32 0.0, %v826
    %v828 = vpop.f32.mrb[0].mxu0
    %v829 = vadd.f32 0.0, %v828
    %830 = vmatprep.mubr.bf16.mxu0 0
    %831 = vmatmul.mubr.bf16.gmra.mrb[0].mxu0 %v182
    %v832 = vpop.f32.mrb[0].mxu0
    %v833 = vadd.f32 0.0, %v832
    %v834 = vpop.f32.mrb[0].mxu0
    %v835 = vadd.f32 0.0, %v834
    %v836 = vpop.f32.mrb[0].mxu0
    %v837 = vadd.f32 0.0, %v836
    %v838 = vpop.f32.mrb[0].mxu0
    %v839 = vadd.f32 0.0, %v838
    %840 = vmatprep.mubr.bf16.mxu0 0
    %841 = vmatmul.mubr.bf16.gmra.mrb[0].mxu0 %v185
    %v842 = vpop.f32.mrb[0].mxu0
    %v843 = vadd.f32 0.0, %v842
    %v844 = vpop.f32.mrb[0].mxu0
    %v845 = vadd.f32 0.0, %v844
    %v846 = vpop.f32.mrb[0].mxu0
    %v847 = vadd.f32 0.0, %v846
    %v848 = vpop.f32.mrb[0].mxu0
    %v849 = vadd.f32 0.0, %v848
    %850 = vmatprep.mubr.bf16.mxu0 0
    %851 = vmatmul.mubr.bf16.gmra.mrb[0].mxu0 %v188
    %v852 = vpop.f32.mrb[0].mxu0
    %v853 = vadd.f32 0.0, %v852
    %v854 = vpop.f32.mrb[0].mxu0
    %v855 = vadd.f32 0.0, %v854
    %v856 = vpop.f32.mrb[0].mxu0
    %v857 = vadd.f32 0.0, %v856
    %v858 = vpop.f32.mrb[0].mxu0
    %v859 = vadd.f32 0.0, %v858
    %860 = vdwg.mxu0
    %861 = vmatprep.subr.bf16.mxu0 %v759
    %862 = vmatpush1.bf16.msra.mxu0 %v758
    %863 = vmatprep.subr.bf16.mxu0 %v763
    %864 = vmatpush1.bf16.msra.mxu0 %v762
    %865 = vmatprep.subr.bf16.mxu0 %v767
    %866 = vmatpush1.bf16.msra.mxu0 %v766
    %867 = vmatprep.subr.bf16.mxu0 %v771
    %868 = vmatpush1.bf16.msra.mxu0 %v770
    %869 = vmatprep.subr.bf16.mxu0 0
    %870 = vmatpush1.bf16.msra.mxu0 0
    %871 = vmatprep.subr.bf16.mxu0 0
    %872 = vmatpush1.bf16.msra.mxu0 0
    %873 = vmatprep.subr.bf16.mxu0 0
    %874 = vmatpush1.bf16.msra.mxu0 0
    %875 = vmatprep.subr.bf16.mxu0 0
    %876 = vmatpush1.bf16.msra.mxu0 0
    %877 = vmatprep.subr.bf16.mxu0 0
    %878 = vmatpush1.bf16.msra.mxu0 0
    %879 = vmatprep.subr.bf16.mxu0 0
    %880 = vmatpush1.bf16.msra.mxu0 0
    %881 = vmatprep.subr.bf16.mxu0 0
    %882 = vmatpush1.bf16.msra.mxu0 0
    %883 = vmatprep.subr.bf16.mxu0 0
    %884 = vmatpush1.bf16.msra.mxu0 0
    %885 = vmatprep.subr.bf16.mxu0 0
    %886 = vmatpush1.bf16.msra.mxu0 0
    %887 = vmatprep.subr.bf16.mxu0 0
    %888 = vmatpush1.bf16.msra.mxu0 0
    %889 = vmatprep.subr.bf16.mxu0 0
    %890 = vmatpush1.bf16.msra.mxu0 0
    %891 = vmatprep.subr.bf16.mxu0 0
    %892 = vmatpush1.bf16.msra.mxu0 0
    %893 = vmatprep.mubr.bf16.mxu0 0
    %894 = vmatmul.mubr.bf16.gmra.mrb[0].mxu0 %v179
    %v895 = vpop.f32.mrb[0].mxu0
    %v896 = vadd.f32 0.0, %v895
    %v897 = vpop.f32.mrb[0].mxu0
    %v898 = vadd.f32 0.0, %v897
    %v899 = vpop.f32.mrb[0].mxu0
    %v900 = vadd.f32 0.0, %v899
    %v901 = vpop.f32.mrb[0].mxu0
    %v902 = vadd.f32 0.0, %v901
    %903 = vmatprep.mubr.bf16.mxu0 0
    %904 = vmatmul.mubr.bf16.gmra.mrb[0].mxu0 %v182
    %v905 = vpop.f32.mrb[0].mxu0
    %v906 = vadd.f32 0.0, %v905
    %v907 = vpop.f32.mrb[0].mxu0
    %v908 = vadd.f32 0.0, %v907
    %v909 = vpop.f32.mrb[0].mxu0
    %v910 = vadd.f32 0.0, %v909
    %v911 = vpop.f32.mrb[0].mxu0
    %v912 = vadd.f32 0.0, %v911
    %913 = vmatprep.mubr.bf16.mxu0 0
    %914 = vmatmul.mubr.bf16.gmra.mrb[0].mxu0 %v185
    %v915 = vpop.f32.mrb[0].mxu0
    %v916 = vadd.f32 0.0, %v915
    %v917 = vpop.f32.mrb[0].mxu0
    %v918 = vadd.f32 0.0, %v917
    %v919 = vpop.f32.mrb[0].mxu0
    %v920 = vadd.f32 0.0, %v919
    %v921 = vpop.f32.mrb[0].mxu0
    %v922 = vadd.f32 0.0, %v921
    %923 = vmatprep.mubr.bf16.mxu0 0
    %924 = vmatmul.mubr.bf16.gmra.mrb[0].mxu0 %v188
    %v925 = vpop.f32.mrb[0].mxu0
    %v926 = vadd.f32 0.0, %v925
    %v927 = vpop.f32.mrb[0].mxu0
    %v928 = vadd.f32 0.0, %v927
    %v929 = vpop.f32.mrb[0].mxu0
    %v930 = vadd.f32 0.0, %v929
    %v931 = vpop.f32.mrb[0].mxu0
    %v932 = vadd.f32 0.0, %v931
    %933 = vdwg.mxu0
    %vm966 = vcmask 1042432
    %v967 = vrot.slane %v823, 5
    %v968 = vrot.slane %v827, 5
    %v969 = vsel %vm966, %v967, %v968
    %v970 = vrot.slane %v825, 5
    %v971 = vrot.slane %v829, 5
    %v972 = vsel %vm966, %v970, %v971
    %v973 = vrot.slane %v896, 5
    %v974 = vrot.slane %v900, 5
    %v975 = vsel %vm966, %v973, %v974
    %v976 = vrot.slane %v898, 5
    %v977 = vrot.slane %v902, 5
    %v978 = vsel %vm966, %v976, %v977
    %v979 = vrot.slane %v833, 5
    %v980 = vsel %vm966, %v968, %v979
    %v981 = vrot.slane %v835, 5
    %v982 = vsel %vm966, %v971, %v981
    %v983 = vrot.slane %v906, 5
    %v984 = vsel %vm966, %v974, %v983
    %v985 = vrot.slane %v908, 5
    %v986 = vsel %vm966, %v977, %v985
    %v987 = vrot.slane %v837, 5
    %v988 = vsel %vm966, %v979, %v987
    %v989 = vrot.slane %v839, 5
    %v990 = vsel %vm966, %v981, %v989
    %v991 = vrot.slane %v910, 5
    %v992 = vsel %vm966, %v983, %v991
    %v993 = vrot.slane %v912, 5
    %v994 = vsel %vm966, %v985, %v993
    %v995 = vrot.slane %v843, 5
    %v996 = vsel %vm966, %v987, %v995
    %v997 = vrot.slane %v845, 5
    %v998 = vsel %vm966, %v989, %v997
    %v999 = vrot.slane %v916, 5
    %v1000 = vsel %vm966, %v991, %v999
    %v1001 = vrot.slane %v918, 5
    %v1002 = vsel %vm966, %v993, %v1001
    %v1003 = vrot.slane %v847, 5
    %v1004 = vsel %vm966, %v995, %v1003
    %v1005 = vrot.slane %v849, 5
    %v1006 = vsel %vm966, %v997, %v1005
    %v1007 = vrot.slane %v920, 5
    %v1008 = vsel %vm966, %v999, %v1007
    %v1009 = vrot.slane %v922, 5
    %v1010 = vsel %vm966, %v1001, %v1009
    %v1011 = vrot.slane %v853, 5
    %v1012 = vsel %vm966, %v1003, %v1011
    %v1013 = vrot.slane %v855, 5
    %v1014 = vsel %vm966, %v1005, %v1013
    %v1015 = vrot.slane %v926, 5
    %v1016 = vsel %vm966, %v1007, %v1015
    %v1017 = vrot.slane %v928, 5
    %v1018 = vsel %vm966, %v1009, %v1017
    %v1019 = vrot.slane %v857, 5
    %v1020 = vsel %vm966, %v1011, %v1019
    %v1021 = vrot.slane %v859, 5
    %v1022 = vsel %vm966, %v1013, %v1021
    %v1023 = vrot.slane %v930, 5
    %v1024 = vsel %vm966, %v1015, %v1023
    %v1025 = vrot.slane %v932, 5
    %v1026 = vsel %vm966, %v1017, %v1025
    %v1059 = vsel %vm966, %v1019, 0.0
    %v1060 = vsel %vm966, %v1021, 0.0
    %v1061 = vsel %vm966, %v1023, 0.0
    %v1062 = vsel %vm966, %v1025, 0.0
    %v1063 = vadd.f32 %v580, %v969
    %v1064 = vadd.f32 %v582, %v972
    %v1065 = vadd.f32 %v653, %v975
    %v1066 = vadd.f32 %v655, %v978
    %v1067 = vadd.f32 %v584, %v980
    %v1068 = vadd.f32 %v586, %v982
    %v1069 = vadd.f32 %v657, %v984
    %v1070 = vadd.f32 %v659, %v986
    %v1071 = vadd.f32 %v590, %v988
    %v1072 = vadd.f32 %v592, %v990
    %v1073 = vadd.f32 %v663, %v992
    %v1074 = vadd.f32 %v665, %v994
    %v1075 = vadd.f32 %v594, %v996
    %v1076 = vadd.f32 %v596, %v998
    %v1077 = vadd.f32 %v667, %v1000
    %v1078 = vadd.f32 %v669, %v1002
    %v1079 = vadd.f32 %v600, %v1004
    %v1080 = vadd.f32 %v602, %v1006
    %v1081 = vadd.f32 %v673, %v1008
    %v1082 = vadd.f32 %v675, %v1010
    %v1083 = vadd.f32 %v604, %v1012
    %v1084 = vadd.f32 %v606, %v1014
    %v1085 = vadd.f32 %v677, %v1016
    %v1086 = vadd.f32 %v679, %v1018
    %v1087 = vadd.f32 %v610, %v1020
    %v1088 = vadd.f32 %v612, %v1022
    %v1089 = vadd.f32 %v683, %v1024
    %v1090 = vadd.f32 %v685, %v1026
    %v1091 = vadd.f32 %v614, %v1059
    %v1092 = vadd.f32 %v616, %v1060
    %v1093 = vadd.f32 %v687, %v1061
    %v1094 = vadd.f32 %v689, %v1062
    %s1095 = scalar_lea.vmem [#allocation2], 384
    %v1096 = vld [vmem:[%s1095] sm:$0xff]
    %v1097 = vld [vmem:[%s1095 + $0x8] sm:$0xff]
    %v1098 = vld [vmem:[%s1095 + $0x10] sm:$0xff]
    %v1099 = vld [vmem:[%s1095 + $0x18] sm:$0xff]
    %v1100 = vld [vmem:[%s1095 + $0x20] sm:$0xff]
    %v1101 = vld [vmem:[%s1095 + $0x28] sm:$0xff]
    %v1102 = vld [vmem:[%s1095 + $0x30] sm:$0xff]
    %v1103 = vld [vmem:[%s1095 + $0x38] sm:$0xff]
    %v1104 = vld [vmem:[%s1095 + $0x40] sm:$0xff]
    %v1105 = vld [vmem:[%s1095 + $0x48] sm:$0xff]
    %v1106 = vld [vmem:[%s1095 + $0x50] sm:$0xff]
    %v1107 = vld [vmem:[%s1095 + $0x58] sm:$0xff]
    %v1108 = vld [vmem:[%s1095 + $0x60] sm:$0xff]
    %v1109 = vld [vmem:[%s1095 + $0x68] sm:$0xff]
    %v1110 = vld [vmem:[%s1095 + $0x70] sm:$0xff]
    %v1111 = vld [vmem:[%s1095 + $0x78] sm:$0xff]
    %v1128 = vunpack.c.l.b16 %v1096
    %v1129 = vunpack.c.h.b16 %v1096
    %v1130 = vunpack.c.l.b16 %v1097
    %v1131 = vunpack.c.h.b16 %v1097
    %v1132 = vunpack.c.l.b16 %v1098
    %v1133 = vunpack.c.h.b16 %v1098
    %v1134 = vunpack.c.l.b16 %v1099
    %v1135 = vunpack.c.h.b16 %v1099
    %v1136 = vunpack.c.l.b16 %v1100
    %v1137 = vunpack.c.h.b16 %v1100
    %v1138 = vunpack.c.l.b16 %v1101
    %v1139 = vunpack.c.h.b16 %v1101
    %v1140 = vunpack.c.l.b16 %v1102
    %v1141 = vunpack.c.h.b16 %v1102
    %v1142 = vunpack.c.l.b16 %v1103
    %v1143 = vunpack.c.h.b16 %v1103
    %v1144 = vunpack.c.l.b16 %v1104
    %v1145 = vunpack.c.h.b16 %v1104
    %v1146 = vunpack.c.l.b16 %v1105
    %v1147 = vunpack.c.h.b16 %v1105
    %v1148 = vunpack.c.l.b16 %v1106
    %v1149 = vunpack.c.h.b16 %v1106
    %v1150 = vunpack.c.l.b16 %v1107
    %v1151 = vunpack.c.h.b16 %v1107
    %v1152 = vunpack.c.l.b16 %v1108
    %v1153 = vunpack.c.h.b16 %v1108
    %v1154 = vunpack.c.l.b16 %v1109
    %v1155 = vunpack.c.h.b16 %v1109
    %v1156 = vunpack.c.l.b16 %v1110
    %v1157 = vunpack.c.h.b16 %v1110
    %v1158 = vunpack.c.l.b16 %v1111
    %v1159 = vunpack.c.h.b16 %v1111
    %v1160 = vpack.c.b16 %v1132, %v1128
    %v1161 = vpack.c.b16 %v1133, %v1129
    %v1162 = vpack.c.b16 %v1134, %v1130
    %v1163 = vpack.c.b16 %v1135, %v1131
    %v1164 = vpack.c.b16 %v1140, %v1136
    %v1165 = vpack.c.b16 %v1141, %v1137
    %v1166 = vpack.c.b16 %v1142, %v1138
    %v1167 = vpack.c.b16 %v1143, %v1139
    %v1168 = vpack.c.b16 %v1148, %v1144
    %v1169 = vpack.c.b16 %v1149, %v1145
    %v1170 = vpack.c.b16 %v1150, %v1146
    %v1171 = vpack.c.b16 %v1151, %v1147
    %v1172 = vpack.c.b16 %v1156, %v1152
    %v1173 = vpack.c.b16 %v1157, %v1153
    %v1174 = vpack.c.b16 %v1158, %v1154
    %v1175 = vpack.c.b16 %v1159, %v1155
    %1192 = vmatprep.subr.bf16.mxu0 %v1161
    %1193 = vmatpush1.bf16.msra.mxu0 %v1160
    %1194 = vmatprep.subr.bf16.mxu0 %v1165
    %1195 = vmatpush1.bf16.msra.mxu0 %v1164
    %1196 = vmatprep.subr.bf16.mxu0 %v1169
    %1197 = vmatpush1.bf16.msra.mxu0 %v1168
    %1198 = vmatprep.subr.bf16.mxu0 %v1173
    %1199 = vmatpush1.bf16.msra.mxu0 %v1172
    %1200 = vmatprep.subr.bf16.mxu0 0
    %1201 = vmatpush1.bf16.msra.mxu0 0
    %1202 = vmatprep.subr.bf16.mxu0 0
    %1203 = vmatpush1.bf16.msra.mxu0 0
    %1204 = vmatprep.subr.bf16.mxu0 0
    %1205 = vmatpush1.bf16.msra.mxu0 0
    %1206 = vmatprep.subr.bf16.mxu0 0
    %1207 = vmatpush1.bf16.msra.mxu0 0
    %1208 = vmatprep.subr.bf16.mxu0 0
    %1209 = vmatpush1.bf16.msra.mxu0 0
    %1210 = vmatprep.subr.bf16.mxu0 0
    %1211 = vmatpush1.bf16.msra.mxu0 0
    %1212 = vmatprep.subr.bf16.mxu0 0
    %1213 = vmatpush1.bf16.msra.mxu0 0
    %1214 = vmatprep.subr.bf16.mxu0 0
    %1215 = vmatpush1.bf16.msra.mxu0 0
    %1216 = vmatprep.subr.bf16.mxu0 0
    %1217 = vmatpush1.bf16.msra.mxu0 0
    %1218 = vmatprep.subr.bf16.mxu0 0
    %1219 = vmatpush1.bf16.msra.mxu0 0
    %1220 = vmatprep.subr.bf16.mxu0 0
    %1221 = vmatpush1.bf16.msra.mxu0 0
    %1222 = vmatprep.subr.bf16.mxu0 0
    %1223 = vmatpush1.bf16.msra.mxu0 0
    %1224 = vmatprep.mubr.bf16.mxu0 0
    %1225 = vmatmul.mubr.bf16.gmra.mrb[0].mxu0 %v179
    %v1226 = vpop.f32.mrb[0].mxu0
    %v1227 = vadd.f32 0.0, %v1226
    %v1228 = vpop.f32.mrb[0].mxu0
    %v1229 = vadd.f32 0.0, %v1228
    %v1230 = vpop.f32.mrb[0].mxu0
    %v1231 = vadd.f32 0.0, %v1230
    %v1232 = vpop.f32.mrb[0].mxu0
    %v1233 = vadd.f32 0.0, %v1232
    %1234 = vmatprep.mubr.bf16.mxu0 0
    %1235 = vmatmul.mubr.bf16.gmra.mrb[0].mxu0 %v182
    %v1236 = vpop.f32.mrb[0].mxu0
    %v1237 = vadd.f32 0.0, %v1236
    %v1238 = vpop.f32.mrb[0].mxu0
    %v1239 = vadd.f32 0.0, %v1238
    %v1240 = vpop.f32.mrb[0].mxu0
    %v1241 = vadd.f32 0.0, %v1240
    %v1242 = vpop.f32.mrb[0].mxu0
    %v1243 = vadd.f32 0.0, %v1242
    %1244 = vmatprep.mubr.bf16.mxu0 0
    %1245 = vmatmul.mubr.bf16.gmra.mrb[0].mxu0 %v185
    %v1246 = vpop.f32.mrb[0].mxu0
    %v1247 = vadd.f32 0.0, %v1246
    %v1248 = vpop.f32.mrb[0].mxu0
    %v1249 = vadd.f32 0.0, %v1248
    %v1250 = vpop.f32.mrb[0].mxu0
    %v1251 = vadd.f32 0.0, %v1250
    %v1252 = vpop.f32.mrb[0].mxu0
    %v1253 = vadd.f32 0.0, %v1252
    %1254 = vmatprep.mubr.bf16.mxu0 0
    %1255 = vmatmul.mubr.bf16.gmra.mrb[0].mxu0 %v188
    %v1256 = vpop.f32.mrb[0].mxu0
    %v1257 = vadd.f32 0.0, %v1256
    %v1258 = vpop.f32.mrb[0].mxu0
    %v1259 = vadd.f32 0.0, %v1258
    %v1260 = vpop.f32.mrb[0].mxu0
    %v1261 = vadd.f32 0.0, %v1260
    %v1262 = vpop.f32.mrb[0].mxu0
    %v1263 = vadd.f32 0.0, %v1262
    %1264 = vdwg.mxu0
    %1265 = vmatprep.subr.bf16.mxu0 %v1163
    %1266 = vmatpush1.bf16.msra.mxu0 %v1162
    %1267 = vmatprep.subr.bf16.mxu0 %v1167
    %1268 = vmatpush1.bf16.msra.mxu0 %v1166
    %1269 = vmatprep.subr.bf16.mxu0 %v1171
    %1270 = vmatpush1.bf16.msra.mxu0 %v1170
    %1271 = vmatprep.subr.bf16.mxu0 %v1175
    %1272 = vmatpush1.bf16.msra.mxu0 %v1174
    %1273 = vmatprep.subr.bf16.mxu0 0
    %1274 = vmatpush1.bf16.msra.mxu0 0
    %1275 = vmatprep.subr.bf16.mxu0 0
    %1276 = vmatpush1.bf16.msra.mxu0 0
    %1277 = vmatprep.subr.bf16.mxu0 0
    %1278 = vmatpush1.bf16.msra.mxu0 0
    %1279 = vmatprep.subr.bf16.mxu0 0
    %1280 = vmatpush1.bf16.msra.mxu0 0
    %1281 = vmatprep.subr.bf16.mxu0 0
    %1282 = vmatpush1.bf16.msra.mxu0 0
    %1283 = vmatprep.subr.bf16.mxu0 0
    %1284 = vmatpush1.bf16.msra.mxu0 0
    %1285 = vmatprep.subr.bf16.mxu0 0
    %1286 = vmatpush1.bf16.msra.mxu0 0
    %1287 = vmatprep.subr.bf16.mxu0 0
    %1288 = vmatpush1.bf16.msra.mxu0 0
    %1289 = vmatprep.subr.bf16.mxu0 0
    %1290 = vmatpush1.bf16.msra.mxu0 0
    %1291 = vmatprep.subr.bf16.mxu0 0
    %1292 = vmatpush1.bf16.msra.mxu0 0
    %1293 = vmatprep.subr.bf16.mxu0 0
    %1294 = vmatpush1.bf16.msra.mxu0 0
    %1295 = vmatprep.subr.bf16.mxu0 0
    %1296 = vmatpush1.bf16.msra.mxu0 0
    %1297 = vmatprep.mubr.bf16.mxu0 0
    %1298 = vmatmul.mubr.bf16.gmra.mrb[0].mxu0 %v179
    %v1299 = vpop.f32.mrb[0].mxu0
    %v1300 = vadd.f32 0.0, %v1299
    %v1301 = vpop.f32.mrb[0].mxu0
    %v1302 = vadd.f32 0.0, %v1301
    %v1303 = vpop.f32.mrb[0].mxu0
    %v1304 = vadd.f32 0.0, %v1303
    %v1305 = vpop.f32.mrb[0].mxu0
    %v1306 = vadd.f32 0.0, %v1305
    %1307 = vmatprep.mubr.bf16.mxu0 0
    %1308 = vmatmul.mubr.bf16.gmra.mrb[0].mxu0 %v182
    %v1309 = vpop.f32.mrb[0].mxu0
    %v1310 = vadd.f32 0.0, %v1309
    %v1311 = vpop.f32.mrb[0].mxu0
    %v1312 = vadd.f32 0.0, %v1311
    %v1313 = vpop.f32.mrb[0].mxu0
    %v1314 = vadd.f32 0.0, %v1313
    %v1315 = vpop.f32.mrb[0].mxu0
    %v1316 = vadd.f32 0.0, %v1315
    %1317 = vmatprep.mubr.bf16.mxu0 0
    %1318 = vmatmul.mubr.bf16.gmra.mrb[0].mxu0 %v185
    %v1319 = vpop.f32.mrb[0].mxu0
    %v1320 = vadd.f32 0.0, %v1319
    %v1321 = vpop.f32.mrb[0].mxu0
    %v1322 = vadd.f32 0.0, %v1321
    %v1323 = vpop.f32.mrb[0].mxu0
    %v1324 = vadd.f32 0.0, %v1323
    %v1325 = vpop.f32.mrb[0].mxu0
    %v1326 = vadd.f32 0.0, %v1325
    %1327 = vmatprep.mubr.bf16.mxu0 0
    %1328 = vmatmul.mubr.bf16.gmra.mrb[0].mxu0 %v188
    %v1329 = vpop.f32.mrb[0].mxu0
    %v1330 = vadd.f32 0.0, %v1329
    %v1331 = vpop.f32.mrb[0].mxu0
    %v1332 = vadd.f32 0.0, %v1331
    %v1333 = vpop.f32.mrb[0].mxu0
    %v1334 = vadd.f32 0.0, %v1333
    %v1335 = vpop.f32.mrb[0].mxu0
    %v1336 = vadd.f32 0.0, %v1335
    %1337 = vdwg.mxu0
    %vm1370 = vcmask 1041408
    %v1371 = vrot.slane %v1227, 6
    %v1372 = vrot.slane %v1231, 6
    %v1373 = vsel %vm1370, %v1371, %v1372
    %v1374 = vrot.slane %v1229, 6
    %v1375 = vrot.slane %v1233, 6
    %v1376 = vsel %vm1370, %v1374, %v1375
    %v1377 = vrot.slane %v1300, 6
    %v1378 = vrot.slane %v1304, 6
    %v1379 = vsel %vm1370, %v1377, %v1378
    %v1380 = vrot.slane %v1302, 6
    %v1381 = vrot.slane %v1306, 6
    %v1382 = vsel %vm1370, %v1380, %v1381
    %v1383 = vrot.slane %v1237, 6
    %v1384 = vsel %vm1370, %v1372, %v1383
    %v1385 = vrot.slane %v1239, 6
    %v1386 = vsel %vm1370, %v1375, %v1385
    %v1387 = vrot.slane %v1310, 6
    %v1388 = vsel %vm1370, %v1378, %v1387
    %v1389 = vrot.slane %v1312, 6
    %v1390 = vsel %vm1370, %v1381, %v1389
    %v1391 = vrot.slane %v1241, 6
    %v1392 = vsel %vm1370, %v1383, %v1391
    %v1393 = vrot.slane %v1243, 6
    %v1394 = vsel %vm1370, %v1385, %v1393
    %v1395 = vrot.slane %v1314, 6
    %v1396 = vsel %vm1370, %v1387, %v1395
    %v1397 = vrot.slane %v1316, 6
    %v1398 = vsel %vm1370, %v1389, %v1397
    %v1399 = vrot.slane %v1247, 6
    %v1400 = vsel %vm1370, %v1391, %v1399
    %v1401 = vrot.slane %v1249, 6
    %v1402 = vsel %vm1370, %v1393, %v1401
    %v1403 = vrot.slane %v1320, 6
    %v1404 = vsel %vm1370, %v1395, %v1403
    %v1405 = vrot.slane %v1322, 6
    %v1406 = vsel %vm1370, %v1397, %v1405
    %v1407 = vrot.slane %v1251, 6
    %v1408 = vsel %vm1370, %v1399, %v1407
    %v1409 = vrot.slane %v1253, 6
    %v1410 = vsel %vm1370, %v1401, %v1409
    %v1411 = vrot.slane %v1324, 6
    %v1412 = vsel %vm1370, %v1403, %v1411
    %v1413 = vrot.slane %v1326, 6
    %v1414 = vsel %vm1370, %v1405, %v1413
    %v1415 = vrot.slane %v1257, 6
    %v1416 = vsel %vm1370, %v1407, %v1415
    %v1417 = vrot.slane %v1259, 6
    %v1418 = vsel %vm1370, %v1409, %v1417
    %v1419 = vrot.slane %v1330, 6
    %v1420 = vsel %vm1370, %v1411, %v1419
    %v1421 = vrot.slane %v1332, 6
    %v1422 = vsel %vm1370, %v1413, %v1421
    %v1423 = vrot.slane %v1261, 6
    %v1424 = vsel %vm1370, %v1415, %v1423
    %v1425 = vrot.slane %v1263, 6
    %v1426 = vsel %vm1370, %v1417, %v1425
    %v1427 = vrot.slane %v1334, 6
    %v1428 = vsel %vm1370, %v1419, %v1427
    %v1429 = vrot.slane %v1336, 6
    %v1430 = vsel %vm1370, %v1421, %v1429
    %v1463 = vsel %vm1370, %v1423, 0.0
    %v1464 = vsel %vm1370, %v1425, 0.0
    %v1465 = vsel %vm1370, %v1427, 0.0
    %v1466 = vsel %vm1370, %v1429, 0.0
    %v1467 = vadd.f32 %v1063, %v1373
    %v1468 = vadd.f32 %v1064, %v1376
    %v1469 = vadd.f32 %v1065, %v1379
    %v1470 = vadd.f32 %v1066, %v1382
    %v1471 = vadd.f32 %v1067, %v1384
    %v1472 = vadd.f32 %v1068, %v1386
    %v1473 = vadd.f32 %v1069, %v1388
    %v1474 = vadd.f32 %v1070, %v1390
    %v1475 = vadd.f32 %v1071, %v1392
    %v1476 = vadd.f32 %v1072, %v1394
    %v1477 = vadd.f32 %v1073, %v1396
    %v1478 = vadd.f32 %v1074, %v1398
    %v1479 = vadd.f32 %v1075, %v1400
    %v1480 = vadd.f32 %v1076, %v1402
    %v1481 = vadd.f32 %v1077, %v1404
    %v1482 = vadd.f32 %v1078, %v1406
    %v1483 = vadd.f32 %v1079, %v1408
    %v1484 = vadd.f32 %v1080, %v1410
    %v1485 = vadd.f32 %v1081, %v1412
    %v1486 = vadd.f32 %v1082, %v1414
    %v1487 = vadd.f32 %v1083, %v1416
    %v1488 = vadd.f32 %v1084, %v1418
    %v1489 = vadd.f32 %v1085, %v1420
    %v1490 = vadd.f32 %v1086, %v1422
    %v1491 = vadd.f32 %v1087, %v1424
    %v1492 = vadd.f32 %v1088, %v1426
    %v1493 = vadd.f32 %v1089, %v1428
    %v1494 = vadd.f32 %v1090, %v1430
    %v1495 = vadd.f32 %v1091, %v1463
    %v1496 = vadd.f32 %v1092, %v1464
    %v1497 = vadd.f32 %v1093, %v1465
    %v1498 = vadd.f32 %v1094, %v1466
    %v1499 = vld [vmem:[%s2] sm:$0x1]
    %v1501 = vlaneseq
    %v1502 = vshrl.u32 %v1501, 7
    %v1503 = vsub.s32 0, %v1502
    %v1504 = vrot.slane %v1499, %v1503
    %v1506 = vadd.f32 %v1467, %v1504
    %v1507 = vadd.f32 %v1471, %v1504
    %v1508 = vadd.f32 %v1475, %v1504
    %v1509 = vadd.f32 %v1479, %v1504
    %v1510 = vadd.f32 %v1483, %v1504
    %v1511 = vadd.f32 %v1487, %v1504
    %v1512 = vadd.f32 %v1491, %v1504
    %v1513 = vadd.f32 %v1495, %v1504
    %v1514 = vmax.f32 %v1506, 0.0
    %v1515 = vmax.f32 %v1507, 0.0
    %v1516 = vmax.f32 %v1508, 0.0
    %v1517 = vmax.f32 %v1509, 0.0
    %v1518 = vmax.f32 %v1510, 0.0
    %v1519 = vmax.f32 %v1511, 0.0
    %v1520 = vmax.f32 %v1512, 0.0
    %v1521 = vmax.f32 %v1513, 0.0
    %v1522 = vadd.f32 %v1468, %v1504
    %v1523 = vadd.f32 %v1472, %v1504
    %v1524 = vadd.f32 %v1476, %v1504
    %v1525 = vadd.f32 %v1480, %v1504
    %v1526 = vadd.f32 %v1484, %v1504
    %v1527 = vadd.f32 %v1488, %v1504
    %v1528 = vadd.f32 %v1492, %v1504
    %v1529 = vadd.f32 %v1496, %v1504
    %v1530 = vmax.f32 %v1522, 0.0
    %v1531 = vmax.f32 %v1523, 0.0
    %v1532 = vmax.f32 %v1524, 0.0
    %v1533 = vmax.f32 %v1525, 0.0
    %v1534 = vmax.f32 %v1526, 0.0
    %v1535 = vmax.f32 %v1527, 0.0
    %v1536 = vmax.f32 %v1528, 0.0
    %v1537 = vmax.f32 %v1529, 0.0
    %v1538 = vadd.f32 %v1469, %v1504
    %v1539 = vadd.f32 %v1473, %v1504
    %v1540 = vadd.f32 %v1477, %v1504
    %v1541 = vadd.f32 %v1481, %v1504
    %v1542 = vadd.f32 %v1485, %v1504
    %v1543 = vadd.f32 %v1489, %v1504
    %v1544 = vadd.f32 %v1493, %v1504
    %v1545 = vadd.f32 %v1497, %v1504
    %v1546 = vmax.f32 %v1538, 0.0
    %v1547 = vmax.f32 %v1539, 0.0
    %v1548 = vmax.f32 %v1540, 0.0
    %v1549 = vmax.f32 %v1541, 0.0
    %v1550 = vmax.f32 %v1542, 0.0
    %v1551 = vmax.f32 %v1543, 0.0
    %v1552 = vmax.f32 %v1544, 0.0
    %v1553 = vmax.f32 %v1545, 0.0
    %v1554 = vadd.f32 %v1470, %v1504
    %v1555 = vadd.f32 %v1474, %v1504
    %v1556 = vadd.f32 %v1478, %v1504
    %v1557 = vadd.f32 %v1482, %v1504
    %v1558 = vadd.f32 %v1486, %v1504
    %v1559 = vadd.f32 %v1490, %v1504
    %v1560 = vadd.f32 %v1494, %v1504
    %v1561 = vadd.f32 %v1498, %v1504
    %v1562 = vmax.f32 %v1554, 0.0
    %v1563 = vmax.f32 %v1555, 0.0
    %v1564 = vmax.f32 %v1556, 0.0
    %v1565 = vmax.f32 %v1557, 0.0
    %v1566 = vmax.f32 %v1558, 0.0
    %v1567 = vmax.f32 %v1559, 0.0
    %v1568 = vmax.f32 %v1560, 0.0
    %v1569 = vmax.f32 %v1561, 0.0
    %v1570 = vld [vmem:[%s3] sm:$0xff]
    %v1571 = vld [vmem:[%s3 + $0x8] sm:$0xff]
    %v1572 = vld [vmem:[%s3 + $0x10] sm:$0xff]
    %v1573 = vld [vmem:[%s3 + $0x18] sm:$0xff]
    %v1574 = vld [vmem:[%s3 + $0x20] sm:$0xff]
    %v1575 = vld [vmem:[%s3 + $0x28] sm:$0xff]
    %v1576 = vld [vmem:[%s3 + $0x30] sm:$0xff]
    %v1577 = vld [vmem:[%s3 + $0x38] sm:$0xff]
    %v1578 = vld [vmem:[%s4] sm:$0xff]
    %v1579 = vld [vmem:[%s4 + $0x8] sm:$0xff]
    %v1580 = vld [vmem:[%s4 + $0x10] sm:$0xff]
    %v1581 = vld [vmem:[%s4 + $0x18] sm:$0xff]
    %v1582 = vld [vmem:[%s4 + $0x20] sm:$0xff]
    %v1583 = vld [vmem:[%s4 + $0x28] sm:$0xff]
    %v1584 = vld [vmem:[%s4 + $0x30] sm:$0xff]
    %v1585 = vld [vmem:[%s4 + $0x38] sm:$0xff]
    %v1586 = vmul.f32 %v1570, %v1578
    %v1587 = vmul.f32 %v1571, %v1579
    %v1588 = vmul.f32 %v1572, %v1580
    %v1589 = vmul.f32 %v1573, %v1581
    %v1590 = vmul.f32 %v1574, %v1582
    %v1591 = vmul.f32 %v1575, %v1583
    %v1592 = vmul.f32 %v1576, %v1584
    %v1593 = vmul.f32 %v1577, %v1585
    %v1594 = vmax.f32 %v1514, %v1530
    %v1595 = vmax.f32 %v1515, %v1531
    %v1596 = vmax.f32 %v1516, %v1532
    %v1597 = vmax.f32 %v1517, %v1533
    %v1598 = vmax.f32 %v1518, %v1534
    %v1599 = vmax.f32 %v1519, %v1535
    %v1600 = vmax.f32 %v1520, %v1536
    %v1601 = vmax.f32 %v1521, %v1537
    %v1602 = vmax.f32 %v1594, %v1546
    %v1603 = vmax.f32 %v1595, %v1547
    %v1604 = vmax.f32 %v1596, %v1548
    %v1605 = vmax.f32 %v1597, %v1549
    %v1606 = vmax.f32 %v1598, %v1550
    %v1607 = vmax.f32 %v1599, %v1551
    %v1608 = vmax.f32 %v1600, %v1552
    %v1609 = vmax.f32 %v1601, %v1553
    %v1610 = vmax.f32 %v1602, %v1562
    %v1611 = vmax.f32 %v1603, %v1563
    %v1612 = vmax.f32 %v1604, %v1564
    %v1613 = vmax.f32 %v1605, %v1565
    %v1614 = vmax.f32 %v1606, %v1566
    %v1615 = vmax.f32 %v1607, %v1567
    %v1616 = vmax.f32 %v1608, %v1568
    %v1617 = vmax.f32 %v1609, %v1569
    %vm1626 = vcmask 1040384
    %v1627 = vrot.slane %v1530, 7
    %v1628 = vrot.slane %v1531, 7
    %v1629 = vsel %vm1626, %v1627, %v1628
    %v1630 = vrot.slane %v1532, 7
    %v1631 = vsel %vm1626, %v1628, %v1630
    %v1632 = vrot.slane %v1533, 7
    %v1633 = vsel %vm1626, %v1630, %v1632
    %v1634 = vrot.slane %v1534, 7
    %v1635 = vsel %vm1626, %v1632, %v1634
    %v1636 = vrot.slane %v1535, 7
    %v1637 = vsel %vm1626, %v1634, %v1636
    %v1638 = vrot.slane %v1536, 7
    %v1639 = vsel %vm1626, %v1636, %v1638
    %v1640 = vrot.slane %v1537, 7
    %v1641 = vsel %vm1626, %v1638, %v1640
    %v1650 = vsel %vm1626, 0.0, %v1627
    %1652 = vset.pattern.permute.xlu0 0
    %1653 = vperm.xlu0 %1652, %v1578
    %v1654 = vpop.permute.xlu0 %1653
    %1657 = vset.pattern.permute.xlu0 0
    %1658 = vperm.xlu0 %1657, %v1579
    %v1659 = vpop.permute.xlu0 %1658
    %1662 = vset.pattern.permute.xlu0 0
    %1663 = vperm.xlu0 %1662, %v1580
    %v1664 = vpop.permute.xlu0 %1663
    %1667 = vset.pattern.permute.xlu0 0
    %1668 = vperm.xlu0 %1667, %v1581
    %v1669 = vpop.permute.xlu0 %1668
    %1672 = vset.pattern.permute.xlu0 0
    %1673 = vperm.xlu0 %1672, %v1582
    %v1674 = vpop.permute.xlu0 %1673
    %1677 = vset.pattern.permute.xlu0 0
    %1678 = vperm.xlu0 %1677, %v1583
    %v1679 = vpop.permute.xlu0 %1678
    %1682 = vset.pattern.permute.xlu0 0
    %1683 = vperm.xlu0 %1682, %v1584
    %v1684 = vpop.permute.xlu0 %1683
    %1687 = vset.pattern.permute.xlu0 0
    %1688 = vperm.xlu0 %1687, %v1585
    %v1689 = vpop.permute.xlu0 %1688
    %v1691 = vmul.f32 %v1650, %v1654
    %v1692 = vmul.f32 %v1629, %v1659
    %v1693 = vmul.f32 %v1631, %v1664
    %v1694 = vmul.f32 %v1633, %v1669
    %v1695 = vmul.f32 %v1635, %v1674
    %v1696 = vmul.f32 %v1637, %v1679
    %v1697 = vmul.f32 %v1639, %v1684
    %v1698 = vmul.f32 %v1641, %v1689
    %v1699 = vmax.f32 %v1610, %v1691
    %v1700 = vmax.f32 %v1611, %v1692
    %v1701 = vmax.f32 %v1612, %v1693
    %v1702 = vmax.f32 %v1613, %v1694
    %v1703 = vmax.f32 %v1614, %v1695
    %v1704 = vmax.f32 %v1615, %v1696
    %v1705 = vmax.f32 %v1616, %v1697
    %v1706 = vmax.f32 %v1617, %v1698
    %v1715 = vrot.slane %v1562, 7
    %v1716 = vrot.slane %v1563, 7
    %v1717 = vsel %vm1626, %v1715, %v1716
    %v1718 = vrot.slane %v1564, 7
    %v1719 = vsel %vm1626, %v1716, %v1718
    %v1720 = vrot.slane %v1565, 7
    %v1721 = vsel %vm1626, %v1718, %v1720
    %v1722 = vrot.slane %v1566, 7
    %v1723 = vsel %vm1626, %v1720, %v1722
    %v1724 = vrot.slane %v1567, 7
    %v1725 = vsel %vm1626, %v1722, %v1724
    %v1726 = vrot.slane %v1568, 7
    %v1727 = vsel %vm1626, %v1724, %v1726
    %v1728 = vrot.slane %v1569, 7
    %v1729 = vsel %vm1626, %v1726, %v1728
    %v1738 = vsel %vm1626, 0.0, %v1715
    %v1739 = vmul.f32 %v1738, %v1654
    %v1740 = vmul.f32 %v1717, %v1659
    %v1741 = vmul.f32 %v1719, %v1664
    %v1742 = vmul.f32 %v1721, %v1669
    %v1743 = vmul.f32 %v1723, %v1674
    %v1744 = vmul.f32 %v1725, %v1679
    %v1745 = vmul.f32 %v1727, %v1684
    %v1746 = vmul.f32 %v1729, %v1689
    %v1747 = vmax.f32 %v1699, %v1739
    %v1748 = vmax.f32 %v1700, %v1740
    %v1749 = vmax.f32 %v1701, %v1741
    %v1750 = vmax.f32 %v1702, %v1742
    %v1751 = vmax.f32 %v1703, %v1743
    %v1752 = vmax.f32 %v1704, %v1744
    %v1753 = vmax.f32 %v1705, %v1745
    %v1754 = vmax.f32 %v1706, %v1746
    %vm1763 = vcmask 1044480
    %v1764 = vrot.slane %v1546, 3
    %v1765 = vrot.slane %v1547, 3
    %v1766 = vsel %vm1763, %v1764, %v1765
    %v1767 = vrot.slane %v1548, 3
    %v1768 = vsel %vm1763, %v1765, %v1767
    %v1769 = vrot.slane %v1549, 3
    %v1770 = vsel %vm1763, %v1767, %v1769
    %v1771 = vrot.slane %v1550, 3
    %v1772 = vsel %vm1763, %v1769, %v1771
    %v1773 = vrot.slane %v1551, 3
    %v1774 = vsel %vm1763, %v1771, %v1773
    %v1775 = vrot.slane %v1552, 3
    %v1776 = vsel %vm1763, %v1773, %v1775
    %v1777 = vrot.slane %v1553, 3
    %v1778 = vsel %vm1763, %v1775, %v1777
    %v1787 = vsel %vm1763, 0.0, %v1764
    %1789 = vset.pattern.permute.xlu0 0
    %1790 = vperm.xlu0 %1789, %v1570
    %v1791 = vpop.permute.xlu0 %1790
    %1794 = vset.pattern.permute.xlu0 0
    %1795 = vperm.xlu0 %1794, %v1571
    %v1796 = vpop.permute.xlu0 %1795
    %1799 = vset.pattern.permute.xlu0 0
    %1800 = vperm.xlu0 %1799, %v1572
    %v1801 = vpop.permute.xlu0 %1800
    %1804 = vset.pattern.permute.xlu0 0
    %1805 = vperm.xlu0 %1804, %v1573
    %v1806 = vpop.permute.xlu0 %1805
    %1809 = vset.pattern.permute.xlu0 0
    %1810 = vperm.xlu0 %1809, %v1574
    %v1811 = vpop.permute.xlu0 %1810
    %1814 = vset.pattern.permute.xlu0 0
    %1815 = vperm.xlu0 %1814, %v1575
    %v1816 = vpop.permute.xlu0 %1815
    %1819 = vset.pattern.permute.xlu0 0
    %1820 = vperm.xlu0 %1819, %v1576
    %v1821 = vpop.permute.xlu0 %1820
    %1824 = vset.pattern.permute.xlu0 0
    %1825 = vperm.xlu0 %1824, %v1577
    %v1826 = vpop.permute.xlu0 %1825
    %v1828 = vmul.f32 %v1787, %v1791
    %v1829 = vmul.f32 %v1766, %v1796
    %v1830 = vmul.f32 %v1768, %v1801
    %v1831 = vmul.f32 %v1770, %v1806
    %v1832 = vmul.f32 %v1772, %v1811
    %v1833 = vmul.f32 %v1774, %v1816
    %v1834 = vmul.f32 %v1776, %v1821
    %v1835 = vmul.f32 %v1778, %v1826
    %v1836 = vmax.f32 %v1747, %v1828
    %v1837 = vmax.f32 %v1748, %v1829
    %v1838 = vmax.f32 %v1749, %v1830
    %v1839 = vmax.f32 %v1750, %v1831
    %v1840 = vmax.f32 %v1751, %v1832
    %v1841 = vmax.f32 %v1752, %v1833
    %v1842 = vmax.f32 %v1753, %v1834
    %v1843 = vmax.f32 %v1754, %v1835
    %v1844 = vrot.slane %v1562, 3
    %v1845 = vrot.slane %v1563, 3
    %v1846 = vsel %vm1763, %v1844, %v1845
    %v1847 = vrot.slane %v1564, 3
    %v1848 = vsel %vm1763, %v1845, %v1847
    %v1849 = vrot.slane %v1565, 3
    %v1850 = vsel %vm1763, %v1847, %v1849
    %v1851 = vrot.slane %v1566, 3
    %v1852 = vsel %vm1763, %v1849, %v1851
    %v1853 = vrot.slane %v1567, 3
    %v1854 = vsel %vm1763, %v1851, %v1853
    %v1855 = vrot.slane %v1568, 3
    %v1856 = vsel %vm1763, %v1853, %v1855
    %v1857 = vrot.slane %v1569, 3
    %v1858 = vsel %vm1763, %v1855, %v1857
    %v1867 = vsel %vm1763, 0.0, %v1844
    %v1868 = vmul.f32 %v1867, %v1791
    %v1869 = vmul.f32 %v1846, %v1796
    %v1870 = vmul.f32 %v1848, %v1801
    %v1871 = vmul.f32 %v1850, %v1806
    %v1872 = vmul.f32 %v1852, %v1811
    %v1873 = vmul.f32 %v1854, %v1816
    %v1874 = vmul.f32 %v1856, %v1821
    %v1875 = vmul.f32 %v1858, %v1826
    %v1876 = vmax.f32 %v1836, %v1868
    %v1877 = vmax.f32 %v1837, %v1869
    %v1878 = vmax.f32 %v1838, %v1870
    %v1879 = vmax.f32 %v1839, %v1871
    %v1880 = vmax.f32 %v1840, %v1872
    %v1881 = vmax.f32 %v1841, %v1873
    %v1882 = vmax.f32 %v1842, %v1874
    %v1883 = vmax.f32 %v1843, %v1875
    %vm1884 = vcmask 1045504
    %v1885 = vrot.slane %v1562, 2
    %v1886 = vrot.slane %v1563, 2
    %v1887 = vsel %vm1884, %v1885, %v1886
    %v1888 = vrot.slane %v1564, 2
    %v1889 = vsel %vm1884, %v1886, %v1888
    %v1890 = vrot.slane %v1565, 2
    %v1891 = vsel %vm1884, %v1888, %v1890
    %v1892 = vrot.slane %v1566, 2
    %v1893 = vsel %vm1884, %v1890, %v1892
    %v1894 = vrot.slane %v1567, 2
    %v1895 = vsel %vm1884, %v1892, %v1894
    %v1896 = vrot.slane %v1568, 2
    %v1897 = vsel %vm1884, %v1894, %v1896
    %v1898 = vrot.slane %v1569, 2
    %v1899 = vsel %vm1884, %v1896, %v1898
    %v1908 = vsel %vm1884, 0.0, %v1885
    %1910 = vset.pattern.permute.xlu0 0
    %1911 = vperm.xlu0 %1910, %v1586
    %v1912 = vpop.permute.xlu0 %1911
    %1915 = vset.pattern.permute.xlu0 0
    %1916 = vperm.xlu0 %1915, %v1587
    %v1917 = vpop.permute.xlu0 %1916
    %1920 = vset.pattern.permute.xlu0 0
    %1921 = vperm.xlu0 %1920, %v1588
    %v1922 = vpop.permute.xlu0 %1921
    %1925 = vset.pattern.permute.xlu0 0
    %1926 = vperm.xlu0 %1925, %v1589
    %v1927 = vpop.permute.xlu0 %1926
    %1930 = vset.pattern.permute.xlu0 0
    %1931 = vperm.xlu0 %1930, %v1590
    %v1932 = vpop.permute.xlu0 %1931
    %1935 = vset.pattern.permute.xlu0 0
    %1936 = vperm.xlu0 %1935, %v1591
    %v1937 = vpop.permute.xlu0 %1936
    %1940 = vset.pattern.permute.xlu0 0
    %1941 = vperm.xlu0 %1940, %v1592
    %v1942 = vpop.permute.xlu0 %1941
    %1945 = vset.pattern.permute.xlu0 0
    %1946 = vperm.xlu0 %1945, %v1593
    %v1947 = vpop.permute.xlu0 %1946
    %v1949 = vmul.f32 %v1908, %v1912
    %v1950 = vmul.f32 %v1887, %v1917
    %v1951 = vmul.f32 %v1889, %v1922
    %v1952 = vmul.f32 %v1891, %v1927
    %v1953 = vmul.f32 %v1893, %v1932
    %v1954 = vmul.f32 %v1895, %v1937
    %v1955 = vmul.f32 %v1897, %v1942
    %v1956 = vmul.f32 %v1899, %v1947
    %v1957 = vmax.f32 %v1876, %v1949
    %v1958 = vmax.f32 %v1877, %v1950
    %v1959 = vmax.f32 %v1878, %v1951
    %v1960 = vmax.f32 %v1879, %v1952
    %v1961 = vmax.f32 %v1880, %v1953
    %v1962 = vmax.f32 %v1881, %v1954
    %v1963 = vmax.f32 %v1882, %v1955
    %v1964 = vmax.f32 %v1883, %v1956
    %1965 = vst [vmem:[#allocation5] sm:$0xff] %v1957
    %1966 = vst [vmem:[#allocation5 + $0x8] sm:$0xff] %v1958
    %1967 = vst [vmem:[#allocation5 + $0x10] sm:$0xff] %v1959
    %1968 = vst [vmem:[#allocation5 + $0x18] sm:$0xff] %v1960
    %1969 = vst [vmem:[#allocation5 + $0x20] sm:$0xff] %v1961
    %1970 = vst [vmem:[#allocation5 + $0x28] sm:$0xff] %v1962
    %1971 = vst [vmem:[#allocation5 + $0x30] sm:$0xff] %v1963
    %1972 = vst [vmem:[#allocation5 + $0x38] sm:$0xff] %v1964
    // Predicated region
    $region26: #{tpu_custom_call.1} parent=1 // pred_check
      _
    $region27: #{tpu_custom_call.1} parent=1 // pred_check_branch
      %1974 = sbr.rel (0) target = $region29
    $region28: #{tpu_custom_call.1} parent=1 // pred_region
      %s1976 = ssub.s32 1024, 1024
      %1977 = vsyncadd [#allocation4], %s1976
      %s1978 = sshll.u32 [#allocation5], 4
      %s1979 = int_to_ptr.vmem [resolvable:$true] %s1978
      %1984 = dma.vmem_to_hbm [thread:$0]  %s1979, 1024, %s5, [#allocation4], 128, 128, 8
    $region29: #{tpu_custom_call.1} parent=1 // pred_fallthru
      _
    // Predicated region
    $region30: #{tpu_custom_call.1} parent=1 // pred_check
      _
    $region31: #{tpu_custom_call.1} parent=1 // pred_check_branch
      %1986 = sbr.rel (0) target = $region33
    $region32: #{tpu_custom_call.1} parent=1 // pred_region
      %1987 = dma.done [#allocation4], 1024
    $region33: #{tpu_custom_call.1} parent=1 // pred_fallthru
      _
    %1988 = vsyncpa [#allocation3], 1
    %1989 = vsyncpa [#allocation4], 1

</llo_original>
